<compile_context>
chip_gen: v6e
topology: v6e:2x2x1
jax: 0.10.0
libtpu: 0.0.40
codegen_flags: <defaults>
</compile_context>

<pallas_src>
import math

import jax
import jax.numpy as jnp
from jax import lax
from jax.experimental import pallas as pl
from jax.experimental.pallas import tpu as pltpu


def _make_block_kernel(num_heads, head_dim, nb, T, E, compute_dtype, approx_recip):
    eps = 1e-5
    inv_sqrt2 = 1.0 / math.sqrt(2.0)
    NEG = -1e30
    R = nb * T  # rows processed per grid step

    def kernel(x_ref, w_in_ref, b_in_ref, w_out_ref, b_out_ref,
               g1_ref, be1_ref, g2_ref, be2_ref,
               w_fc_ref, b_fc_ref, w_pr_ref, b_pr_ref, o_ref):
        # (nb, T, E) -> (nb*T, E): big M dimension for the dense matmuls.
        x = x_ref[...].reshape(R, E)

        def layer_norm(v, g, b):
            mu = jnp.mean(v, axis=-1, keepdims=True)
            var = jnp.mean((v - mu) ** 2, axis=-1, keepdims=True)
            return (v - mu) * lax.rsqrt(var + eps) * g + b

        # ---------------- ln_1 ----------------
        xn1 = layer_norm(x, g1_ref[...], be1_ref[...])

        # ------------- QKV projection (one big matmul; 1/sqrt(Dh) already folded into Wq/bq)
        qkv = jnp.dot(xn1.astype(compute_dtype), w_in_ref[...],
                      preferred_element_type=jnp.float32) + b_in_ref[...]   # (R, 3E), f32
        q = qkv[:, :E]
        k = qkv[:, E:2 * E]
        v = qkv[:, 2 * E:]

        row = lax.broadcasted_iota(jnp.int32, (T, T), 0)
        col = lax.broadcasted_iota(jnp.int32, (T, T), 1)
        causal = col <= row

        # TODO(synk): for long sequences, replace the materialized (T, T) scores with a
        # KV-blocked online-softmax (flash) loop and tile queries on a second parallel grid
        # axis (needed for v7x's 64 MiB VMEM and its 2 TensorCores).
        o_rows = []
        for b in range(nb):                      # nb and num_heads are small, static loops
            rs = slice(b * T, (b + 1) * T)
            o_heads = []
            for h in range(num_heads):
                cs = slice(h * head_dim, (h + 1) * head_dim)
                qh = q[rs, cs].astype(compute_dtype)
                kh = k[rs, cs].astype(compute_dtype)
                vh = v[rs, cs].astype(compute_dtype)
                # scores = qh @ kh^T (contract last dims, no explicit transpose)
                s = lax.dot_general(qh, kh, (((1,), (1,)), ((), ())),
                                    preferred_element_type=jnp.float32)     # (T, T)
                s = jnp.where(causal, s, NEG)
                s = s - jnp.max(s, axis=-1, keepdims=True)
                p = jnp.exp(s)
                l = jnp.sum(p, axis=-1, keepdims=True)
                # deferred softmax normalization: scale after P@V (T*Dh muls, not T*T divides)
                oh = jnp.dot(p.astype(compute_dtype), vh,
                             preferred_element_type=jnp.float32)            # (T, Dh)
                oh = oh * pl.reciprocal(l, approx=approx_recip)
                o_heads.append(oh)
            o_rows.append(jnp.concatenate(o_heads, axis=-1))                # (T, E)
        o_cat = o_rows[0] if nb == 1 else jnp.concatenate(o_rows, axis=0)   # (R, E)

        # single output projection with K = E
        attn = jnp.dot(o_cat.astype(compute_dtype), w_out_ref[...],
                       preferred_element_type=jnp.float32) + b_out_ref[...]

        # NOTE: residual uses ln_1(x), exactly as in the PyTorch forward()
        x1 = xn1 + attn

        # ------------- ln_2 + MLP --------------
        xn2 = layer_norm(x1, g2_ref[...], be2_ref[...])
        h1 = jnp.dot(xn2.astype(compute_dtype), w_fc_ref[...],
                     preferred_element_type=jnp.float32) + b_fc_ref[...]    # (R, 4E)
        h1 = 0.5 * h1 * (1.0 + lax.erf(h1 * inv_sqrt2))                     # exact GELU
        m = jnp.dot(h1.astype(compute_dtype), w_pr_ref[...],
                    preferred_element_type=jnp.float32) + b_pr_ref[...]     # (R, E)

        o_ref[...] = (x1 + m).reshape(nb, T, E).astype(o_ref.dtype)

    return kernel


def _pick_block_b(B, T):
    """Largest divisor of B such that nb*T stays a reasonable MXU M dimension."""
    if T % 8 != 0:          # keep the (nb,T,E)->(nb*T,E) reshape layout-free
        return 1
    cap = max(1, 256 // T)
    best = 1
    for d in range(1, B + 1):
        if B % d == 0 and d <= cap:
            best = d
    return best


def block_forward(x_tbe, params, num_heads, compute_dtype=jnp.bfloat16, block_b=None):
    """x_tbe: (T, B, E) float32, seq-first like the PyTorch module."""
    T, B, E = x_tbe.shape
    head_dim = E // num_heads
    (w_in, b_in, w_out, b_out, g1, be1, g2, be2, w_fc, b_fc, w_pr, b_pr) = params

    if block_b is None:
        block_b = _pick_block_b(B, T)
    assert B % block_b == 0

    x_bte = jnp.transpose(x_tbe, (1, 0, 2)).astype(jnp.float32)   # (B, T, E)

    # Fold 1/sqrt(head_dim) into the Q rows of the in-projection (host-side weight fold).
    scale = 1.0 / math.sqrt(head_dim)
    w_in_f = w_in.at[:E, :].multiply(scale)
    b_in_f = b_in.at[:E].multiply(scale)

    approx_recip = compute_dtype != jnp.float32

    # MXU operands in compute_dtype (bf16 by default); biases / LN params stay f32.
    w_in_t = w_in_f.T.astype(compute_dtype)   # (E, 3E)
    w_out_t = w_out.T.astype(compute_dtype)   # (E, E)
    w_fc_t = w_fc.T.astype(compute_dtype)     # (E, 4E)
    w_pr_t = w_pr.T.astype(compute_dtype)     # (4E, E)
    row2 = lambda a: a.reshape(1, -1).astype(jnp.float32)

    kernel = _make_block_kernel(num_heads, head_dim, block_b, T, E,
                                compute_dtype, approx_recip)
    const2d = lambda shape: pl.BlockSpec(shape, lambda b: (0, 0))
    # TODO(synk): for large E, single-buffer the grid-invariant weight BlockSpecs
    # (pipeline_mode=pl.Buffered(1)) and tile the MLP hidden dim to fit v7x's 64 MiB VMEM.

    out = pl.pallas_call(
        kernel,
        grid=(B // block_b,),
        in_specs=[
            pl.BlockSpec((block_b, T, E), lambda b: (b, 0, 0)),   # x, block_b batches per step
            const2d((E, 3 * E)),                                  # in_proj weight^T (scaled Q)
            const2d((1, 3 * E)),                                  # in_proj bias (scaled Q)
            const2d((E, E)),                                      # out_proj weight^T
            const2d((1, E)),                                      # out_proj bias
            const2d((1, E)), const2d((1, E)),                     # ln_1 gamma / beta
            const2d((1, E)), const2d((1, E)),                     # ln_2 gamma / beta
            const2d((E, 4 * E)),                                  # mlp fc weight^T
            const2d((1, 4 * E)),                                  # mlp fc bias
            const2d((4 * E, E)),                                  # mlp proj weight^T
            const2d((1, E)),                                      # mlp proj bias
        ],
        out_specs=pl.BlockSpec((block_b, T, E), lambda b: (b, 0, 0)),
        out_shape=jax.ShapeDtypeStruct((B, T, E), jnp.float32),
        compiler_params=pltpu.CompilerParams(
            dimension_semantics=("parallel",),
            vmem_limit_bytes=48 * 1024 * 1024,   # explicit; fits v5e/v6e/v7x budgets
        ),
    )(x_bte, w_in_t, row2(b_in_f), w_out_t, row2(b_out),
      row2(g1), row2(be1), row2(g2), row2(be2),
      w_fc_t, row2(b_fc), w_pr_t, row2(b_pr))

    return jnp.transpose(out, (1, 0, 2))             # back to (T, B, E)


def block_reference(x, params, num_heads):
    """Pure-JAX f32 reference mirroring the PyTorch forward (for validation)."""
    T, B, E = x.shape
    Dh = E // num_heads
    (w_in, b_in, w_out, b_out, g1, be1, g2, be2, w_fc, b_fc, w_pr, b_pr) = params

    def ln(v, g, b):
        mu = v.mean(-1, keepdims=True)
        var = ((v - mu) ** 2).mean(-1, keepdims=True)
        return (v - mu) / jnp.sqrt(var + 1e-5) * g + b

    xn = ln(x, g1, be1)
    qkv = xn @ w_in.T + b_in
    q, k, v = jnp.split(qkv, 3, axis=-1)
    heads = lambda t: t.reshape(T, B, num_heads, Dh).transpose(1, 2, 0, 3)
    qh, kh, vh = heads(q), heads(k), heads(v)
    s = jnp.einsum('bhtd,bhsd->bhts', qh, kh) / math.sqrt(Dh)
    r = jnp.arange(T)[:, None]
    c = jnp.arange(T)[None, :]
    s = s + jnp.where(c > r, -jnp.inf, 0.0)
    p = jax.nn.softmax(s, axis=-1)
    o = jnp.einsum('bhts,bhsd->bhtd', p, vh).transpose(2, 0, 1, 3).reshape(T, B, E)
    a = o @ w_out.T + b_out
    x1 = xn + a
    xn2 = ln(x1, g2, be2)
    h1 = xn2 @ w_fc.T + b_fc
    h1 = 0.5 * h1 * (1.0 + lax.erf(h1 / math.sqrt(2.0)))
    m = h1 @ w_pr.T + b_pr
    return x1 + m


if __name__ == "__main__":
    T, B, E, H = 8, 2, 32, 4
    key = jax.random.PRNGKey(0)
    ks = jax.random.split(key, 13)

    x = jax.random.normal(ks[0], (T, B, E), jnp.float32)

    w_in = 0.05 * jax.random.normal(ks[1], (3 * E, E), jnp.float32)
    b_in = 0.05 * jax.random.normal(ks[2], (3 * E,), jnp.float32)
    w_out = 0.05 * jax.random.normal(ks[3], (E, E), jnp.float32)
    b_out = 0.05 * jax.random.normal(ks[4], (E,), jnp.float32)
    g1 = 1.0 + 0.1 * jax.random.normal(ks[5], (E,), jnp.float32)
    be1 = 0.05 * jax.random.normal(ks[6], (E,), jnp.float32)
    g2 = 1.0 + 0.1 * jax.random.normal(ks[7], (E,), jnp.float32)
    be2 = 0.05 * jax.random.normal(ks[8], (E,), jnp.float32)
    w_fc = 0.05 * jax.random.normal(ks[9], (4 * E, E), jnp.float32)
    b_fc = 0.05 * jax.random.normal(ks[10], (4 * E,), jnp.float32)
    w_pr = 0.05 * jax.random.normal(ks[11], (E, 4 * E), jnp.float32)
    b_pr = 0.05 * jax.random.normal(ks[12], (E,), jnp.float32)

    params = (w_in, b_in, w_out, b_out, g1, be1, g2, be2, w_fc, b_fc, w_pr, b_pr)

    ref = block_reference(x, params, H)

    # Exact-precision path (f32 MXU operands): tight check.
    out_f32 = jax.block_until_ready(block_forward(x, params, H, compute_dtype=jnp.float32))
    assert out_f32.shape == (T, B, E)
    err32 = float(jnp.max(jnp.abs(out_f32 - ref)))
    assert jnp.allclose(out_f32, ref, atol=1e-4, rtol=1e-4), f"f32 max abs err {err32}"

    # Default fast path (bf16 MXU operands, f32 accumulation): bf16-level tolerance.
    out_bf16 = jax.block_until_ready(block_forward(x, params, H))
    assert out_bf16.shape == (T, B, E)
    errbf = float(jnp.max(jnp.abs(out_bf16 - ref)))
    assert jnp.allclose(out_bf16, ref, atol=5e-2, rtol=5e-2), f"bf16 max abs err {errbf}"

    print("KERNEL_OK")
</pallas_src>

<mosaic_0001>
module attributes {stable_mosaic.version = 11 : i64} {
  func.func @kernel(%arg0: i32, %arg1: memref<2x8x32xf32, #tpu.memory_space<vmem>>, %arg2: memref<32x96xf32, #tpu.memory_space<vmem>>, %arg3: memref<1x96xf32, #tpu.memory_space<vmem>>, %arg4: memref<32x32xf32, #tpu.memory_space<vmem>>, %arg5: memref<1x32xf32, #tpu.memory_space<vmem>>, %arg6: memref<1x32xf32, #tpu.memory_space<vmem>>, %arg7: memref<1x32xf32, #tpu.memory_space<vmem>>, %arg8: memref<1x32xf32, #tpu.memory_space<vmem>>, %arg9: memref<1x32xf32, #tpu.memory_space<vmem>>, %arg10: memref<32x128xf32, #tpu.memory_space<vmem>>, %arg11: memref<1x128xf32, #tpu.memory_space<vmem>>, %arg12: memref<128x32xf32, #tpu.memory_space<vmem>>, %arg13: memref<1x32xf32, #tpu.memory_space<vmem>>, %arg14: memref<2x8x32xf32, #tpu.memory_space<vmem>>) attributes {dimension_semantics = [#tpu.dimension_semantics<parallel>], iteration_bounds = array<i64: 1>, scalar_prefetch = 0 : i64, scratch_operands = 0 : i64, tpu.core_type = #tpu.core_type<tc>, window_params = [{transform_indices = @transform_0, window_bounds = array<i64: 2, 8, 32>}, {pipeline_mode = #tpu.pipeline_mode<synchronous>, transform_indices = @transform_1, window_bounds = array<i64: 32, 96>}, {pipeline_mode = #tpu.pipeline_mode<synchronous>, transform_indices = @transform_2, window_bounds = array<i64: 1, 96>}, {pipeline_mode = #tpu.pipeline_mode<synchronous>, transform_indices = @transform_3, window_bounds = array<i64: 32, 32>}, {pipeline_mode = #tpu.pipeline_mode<synchronous>, transform_indices = @transform_4, window_bounds = array<i64: 1, 32>}, {pipeline_mode = #tpu.pipeline_mode<synchronous>, transform_indices = @transform_5, window_bounds = array<i64: 1, 32>}, {pipeline_mode = #tpu.pipeline_mode<synchronous>, transform_indices = @transform_6, window_bounds = array<i64: 1, 32>}, {pipeline_mode = #tpu.pipeline_mode<synchronous>, transform_indices = @transform_7, window_bounds = array<i64: 1, 32>}, {pipeline_mode = #tpu.pipeline_mode<synchronous>, transform_indices = @transform_8, window_bounds = array<i64: 1, 32>}, {pipeline_mode = #tpu.pipeline_mode<synchronous>, transform_indices = @transform_9, window_bounds = array<i64: 32, 128>}, {pipeline_mode = #tpu.pipeline_mode<synchronous>, transform_indices = @transform_10, window_bounds = array<i64: 1, 128>}, {pipeline_mode = #tpu.pipeline_mode<synchronous>, transform_indices = @transform_11, window_bounds = array<i64: 128, 32>}, {pipeline_mode = #tpu.pipeline_mode<synchronous>, transform_indices = @transform_12, window_bounds = array<i64: 1, 32>}, {transform_indices = @transform_13, window_bounds = array<i64: 2, 8, 32>}]} {
    %c0 = arith.constant 0 : index
    %c0_0 = arith.constant 0 : index
    %c0_1 = arith.constant 0 : index
    %0 = vector.load %arg1[%c0, %c0_0, %c0_1] : memref<2x8x32xf32, #tpu.memory_space<vmem>>, vector<2x8x32xf32>
    %1 = vector.shape_cast %0 : vector<2x8x32xf32> to vector<16x32xf32>
    %c0_2 = arith.constant 0 : index
    %c0_3 = arith.constant 0 : index
    %2 = vector.load %arg6[%c0_2, %c0_3] : memref<1x32xf32, #tpu.memory_space<vmem>>, vector<1x32xf32>
    %c0_4 = arith.constant 0 : index
    %c0_5 = arith.constant 0 : index
    %3 = vector.load %arg7[%c0_4, %c0_5] : memref<1x32xf32, #tpu.memory_space<vmem>>, vector<1x32xf32>
    %cst = arith.constant dense<0.000000e+00> : vector<16xf32>
    %4 = vector.multi_reduction <add>, %1, %cst [1] : vector<16x32xf32> to vector<16xf32>
    %5 = vector.shape_cast %4 : vector<16xf32> to vector<16x1xf32>
    %cst_6 = arith.constant 3.200000e+01 : f32
    %6 = vector.broadcast %cst_6 : f32 to vector<16x1xf32>
    %7 = arith.divf %5, %6 : vector<16x1xf32>
    %8 = vector.broadcast %7 : vector<16x1xf32> to vector<16x32xf32>
    %9 = arith.subf %1, %8 : vector<16x32xf32>
    %10 = arith.mulf %9, %9 : vector<16x32xf32>
    %cst_7 = arith.constant dense<0.000000e+00> : vector<16xf32>
    %11 = vector.multi_reduction <add>, %10, %cst_7 [1] : vector<16x32xf32> to vector<16xf32>
    %12 = vector.shape_cast %11 : vector<16xf32> to vector<16x1xf32>
    %cst_8 = arith.constant 3.200000e+01 : f32
    %13 = vector.broadcast %cst_8 : f32 to vector<16x1xf32>
    %14 = arith.divf %12, %13 : vector<16x1xf32>
    %15 = vector.broadcast %7 : vector<16x1xf32> to vector<16x32xf32>
    %16 = arith.subf %1, %15 : vector<16x32xf32>
    %cst_9 = arith.constant 9.99999974E-6 : f32
    %17 = vector.broadcast %cst_9 : f32 to vector<16x1xf32>
    %18 = arith.addf %14, %17 : vector<16x1xf32>
    %19 = math.rsqrt %18 : vector<16x1xf32>
    %20 = vector.broadcast %19 : vector<16x1xf32> to vector<16x32xf32>
    %21 = arith.mulf %16, %20 : vector<16x32xf32>
    %22 = vector.broadcast %2 : vector<1x32xf32> to vector<16x32xf32>
    %23 = arith.mulf %21, %22 : vector<16x32xf32>
    %24 = vector.broadcast %3 : vector<1x32xf32> to vector<16x32xf32>
    %25 = arith.addf %23, %24 : vector<16x32xf32>
    %c0_10 = arith.constant 0 : index
    %c0_11 = arith.constant 0 : index
    %26 = vector.load %arg2[%c0_10, %c0_11] : memref<32x96xf32, #tpu.memory_space<vmem>>, vector<32x96xf32>
    %cst_12 = arith.constant dense<0.000000e+00> : vector<16x96xf32>
    %27 = tpu.matmul %25, %26, %cst_12 {dimension_numbers = #tpu.dot_dimension_numbers<[1], [0], [0], [1], [0, 0, 1, 1], [], []>} : vector<16x32xf32>, vector<32x96xf32>, vector<16x96xf32> -> vector<16x96xf32>
    %c0_13 = arith.constant 0 : index
    %c0_14 = arith.constant 0 : index
    %28 = vector.load %arg3[%c0_13, %c0_14] : memref<1x96xf32, #tpu.memory_space<vmem>>, vector<1x96xf32>
    %29 = vector.broadcast %28 : vector<1x96xf32> to vector<16x96xf32>
    %30 = arith.addf %27, %29 : vector<16x96xf32>
    %31 = vector.extract_strided_slice %30 {offsets = [0, 0], sizes = [16, 32], strides = [1, 1]} : vector<16x96xf32> to vector<16x32xf32>
    %32 = vector.extract_strided_slice %30 {offsets = [0, 32], sizes = [16, 32], strides = [1, 1]} : vector<16x96xf32> to vector<16x32xf32>
    %33 = vector.extract_strided_slice %30 {offsets = [0, 64], sizes = [16, 32], strides = [1, 1]} : vector<16x96xf32> to vector<16x32xf32>
    %34 = tpu.iota {dimensions = array<i32: 0>} : vector<8x8xi32>
    %35 = tpu.iota {dimensions = array<i32: 1>} : vector<8x8xi32>
    %36 = arith.cmpi sle, %35, %34 : vector<8x8xi32>
    %37 = vector.extract_strided_slice %31 {offsets = [0, 0], sizes = [8, 8], strides = [1, 1]} : vector<16x32xf32> to vector<8x8xf32>
    %38 = vector.extract_strided_slice %32 {offsets = [0, 0], sizes = [8, 8], strides = [1, 1]} : vector<16x32xf32> to vector<8x8xf32>
    %39 = vector.extract_strided_slice %33 {offsets = [0, 0], sizes = [8, 8], strides = [1, 1]} : vector<16x32xf32> to vector<8x8xf32>
    %cst_15 = arith.constant dense<0.000000e+00> : vector<8x8xf32>
    %40 = tpu.matmul %37, %38, %cst_15 {dimension_numbers = #tpu.dot_dimension_numbers<[1], [1], [0], [0], [0, 0, 1, 0], [], []>} : vector<8x8xf32>, vector<8x8xf32>, vector<8x8xf32> -> vector<8x8xf32>
    %cst_16 = arith.constant -1.000000e+30 : f32
    %41 = vector.broadcast %cst_16 : f32 to vector<8x8xf32>
    %42 = arith.select %36, %40, %41 : vector<8x8xi1>, vector<8x8xf32>
    %cst_17 = arith.constant dense<0xFF800000> : vector<8xf32>
    %43 = vector.multi_reduction <maximumf>, %42, %cst_17 [1] : vector<8x8xf32> to vector<8xf32>
    %44 = vector.shape_cast %43 : vector<8xf32> to vector<8x1xf32>
    %45 = vector.broadcast %44 : vector<8x1xf32> to vector<8x8xf32>
    %46 = arith.subf %42, %45 : vector<8x8xf32>
    %47 = math.exp %46 : vector<8x8xf32>
    %cst_18 = arith.constant dense<0.000000e+00> : vector<8xf32>
    %48 = vector.multi_reduction <add>, %47, %cst_18 [1] : vector<8x8xf32> to vector<8xf32>
    %49 = vector.shape_cast %48 : vector<8xf32> to vector<8x1xf32>
    %cst_19 = arith.constant dense<0.000000e+00> : vector<8x8xf32>
    %50 = tpu.matmul %47, %39, %cst_19 {dimension_numbers = #tpu.dot_dimension_numbers<[1], [0], [0], [1], [0, 0, 1, 1], [], []>} : vector<8x8xf32>, vector<8x8xf32>, vector<8x8xf32> -> vector<8x8xf32>
    %51 = tpu.reciprocal %49 : vector<8x1xf32> -> vector<8x1xf32>
    %52 = vector.broadcast %51 : vector<8x1xf32> to vector<8x8xf32>
    %53 = arith.mulf %50, %52 : vector<8x8xf32>
    %54 = vector.extract_strided_slice %31 {offsets = [0, 8], sizes = [8, 8], strides = [1, 1]} : vector<16x32xf32> to vector<8x8xf32>
    %55 = vector.extract_strided_slice %32 {offsets = [0, 8], sizes = [8, 8], strides = [1, 1]} : vector<16x32xf32> to vector<8x8xf32>
    %56 = vector.extract_strided_slice %33 {offsets = [0, 8], sizes = [8, 8], strides = [1, 1]} : vector<16x32xf32> to vector<8x8xf32>
    %cst_20 = arith.constant dense<0.000000e+00> : vector<8x8xf32>
    %57 = tpu.matmul %54, %55, %cst_20 {dimension_numbers = #tpu.dot_dimension_numbers<[1], [1], [0], [0], [0, 0, 1, 0], [], []>} : vector<8x8xf32>, vector<8x8xf32>, vector<8x8xf32> -> vector<8x8xf32>
    %cst_21 = arith.constant -1.000000e+30 : f32
    %58 = vector.broadcast %cst_21 : f32 to vector<8x8xf32>
    %59 = arith.select %36, %57, %58 : vector<8x8xi1>, vector<8x8xf32>
    %cst_22 = arith.constant dense<0xFF800000> : vector<8xf32>
    %60 = vector.multi_reduction <maximumf>, %59, %cst_22 [1] : vector<8x8xf32> to vector<8xf32>
    %61 = vector.shape_cast %60 : vector<8xf32> to vector<8x1xf32>
    %62 = vector.broadcast %61 : vector<8x1xf32> to vector<8x8xf32>
    %63 = arith.subf %59, %62 : vector<8x8xf32>
    %64 = math.exp %63 : vector<8x8xf32>
    %cst_23 = arith.constant dense<0.000000e+00> : vector<8xf32>
    %65 = vector.multi_reduction <add>, %64, %cst_23 [1] : vector<8x8xf32> to vector<8xf32>
    %66 = vector.shape_cast %65 : vector<8xf32> to vector<8x1xf32>
    %cst_24 = arith.constant dense<0.000000e+00> : vector<8x8xf32>
    %67 = tpu.matmul %64, %56, %cst_24 {dimension_numbers = #tpu.dot_dimension_numbers<[1], [0], [0], [1], [0, 0, 1, 1], [], []>} : vector<8x8xf32>, vector<8x8xf32>, vector<8x8xf32> -> vector<8x8xf32>
    %68 = tpu.reciprocal %66 : vector<8x1xf32> -> vector<8x1xf32>
    %69 = vector.broadcast %68 : vector<8x1xf32> to vector<8x8xf32>
    %70 = arith.mulf %67, %69 : vector<8x8xf32>
    %71 = vector.extract_strided_slice %31 {offsets = [0, 16], sizes = [8, 8], strides = [1, 1]} : vector<16x32xf32> to vector<8x8xf32>
    %72 = vector.extract_strided_slice %32 {offsets = [0, 16], sizes = [8, 8], strides = [1, 1]} : vector<16x32xf32> to vector<8x8xf32>
    %73 = vector.extract_strided_slice %33 {offsets = [0, 16], sizes = [8, 8], strides = [1, 1]} : vector<16x32xf32> to vector<8x8xf32>
    %cst_25 = arith.constant dense<0.000000e+00> : vector<8x8xf32>
    %74 = tpu.matmul %71, %72, %cst_25 {dimension_numbers = #tpu.dot_dimension_numbers<[1], [1], [0], [0], [0, 0, 1, 0], [], []>} : vector<8x8xf32>, vector<8x8xf32>, vector<8x8xf32> -> vector<8x8xf32>
    %cst_26 = arith.constant -1.000000e+30 : f32
    %75 = vector.broadcast %cst_26 : f32 to vector<8x8xf32>
    %76 = arith.select %36, %74, %75 : vector<8x8xi1>, vector<8x8xf32>
    %cst_27 = arith.constant dense<0xFF800000> : vector<8xf32>
    %77 = vector.multi_reduction <maximumf>, %76, %cst_27 [1] : vector<8x8xf32> to vector<8xf32>
    %78 = vector.shape_cast %77 : vector<8xf32> to vector<8x1xf32>
    %79 = vector.broadcast %78 : vector<8x1xf32> to vector<8x8xf32>
    %80 = arith.subf %76, %79 : vector<8x8xf32>
    %81 = math.exp %80 : vector<8x8xf32>
    %cst_28 = arith.constant dense<0.000000e+00> : vector<8xf32>
    %82 = vector.multi_reduction <add>, %81, %cst_28 [1] : vector<8x8xf32> to vector<8xf32>
    %83 = vector.shape_cast %82 : vector<8xf32> to vector<8x1xf32>
    %cst_29 = arith.constant dense<0.000000e+00> : vector<8x8xf32>
    %84 = tpu.matmul %81, %73, %cst_29 {dimension_numbers = #tpu.dot_dimension_numbers<[1], [0], [0], [1], [0, 0, 1, 1], [], []>} : vector<8x8xf32>, vector<8x8xf32>, vector<8x8xf32> -> vector<8x8xf32>
    %85 = tpu.reciprocal %83 : vector<8x1xf32> -> vector<8x1xf32>
    %86 = vector.broadcast %85 : vector<8x1xf32> to vector<8x8xf32>
    %87 = arith.mulf %84, %86 : vector<8x8xf32>
    %88 = vector.extract_strided_slice %31 {offsets = [0, 24], sizes = [8, 8], strides = [1, 1]} : vector<16x32xf32> to vector<8x8xf32>
    %89 = vector.extract_strided_slice %32 {offsets = [0, 24], sizes = [8, 8], strides = [1, 1]} : vector<16x32xf32> to vector<8x8xf32>
    %90 = vector.extract_strided_slice %33 {offsets = [0, 24], sizes = [8, 8], strides = [1, 1]} : vector<16x32xf32> to vector<8x8xf32>
    %cst_30 = arith.constant dense<0.000000e+00> : vector<8x8xf32>
    %91 = tpu.matmul %88, %89, %cst_30 {dimension_numbers = #tpu.dot_dimension_numbers<[1], [1], [0], [0], [0, 0, 1, 0], [], []>} : vector<8x8xf32>, vector<8x8xf32>, vector<8x8xf32> -> vector<8x8xf32>
    %cst_31 = arith.constant -1.000000e+30 : f32
    %92 = vector.broadcast %cst_31 : f32 to vector<8x8xf32>
    %93 = arith.select %36, %91, %92 : vector<8x8xi1>, vector<8x8xf32>
    %cst_32 = arith.constant dense<0xFF800000> : vector<8xf32>
    %94 = vector.multi_reduction <maximumf>, %93, %cst_32 [1] : vector<8x8xf32> to vector<8xf32>
    %95 = vector.shape_cast %94 : vector<8xf32> to vector<8x1xf32>
    %96 = vector.broadcast %95 : vector<8x1xf32> to vector<8x8xf32>
    %97 = arith.subf %93, %96 : vector<8x8xf32>
    %98 = math.exp %97 : vector<8x8xf32>
    %cst_33 = arith.constant dense<0.000000e+00> : vector<8xf32>
    %99 = vector.multi_reduction <add>, %98, %cst_33 [1] : vector<8x8xf32> to vector<8xf32>
    %100 = vector.shape_cast %99 : vector<8xf32> to vector<8x1xf32>
    %cst_34 = arith.constant dense<0.000000e+00> : vector<8x8xf32>
    %101 = tpu.matmul %98, %90, %cst_34 {dimension_numbers = #tpu.dot_dimension_numbers<[1], [0], [0], [1], [0, 0, 1, 1], [], []>} : vector<8x8xf32>, vector<8x8xf32>, vector<8x8xf32> -> vector<8x8xf32>
    %102 = tpu.reciprocal %100 : vector<8x1xf32> -> vector<8x1xf32>
    %103 = vector.broadcast %102 : vector<8x1xf32> to vector<8x8xf32>
    %104 = arith.mulf %101, %103 : vector<8x8xf32>
    %105 = tpu.concatenate %53, %70, %87, %104 in 1 : vector<8x8xf32>, vector<8x8xf32>, vector<8x8xf32>, vector<8x8xf32> -> vector<8x32xf32>
    %106 = vector.extract_strided_slice %31 {offsets = [8, 0], sizes = [8, 8], strides = [1, 1]} : vector<16x32xf32> to vector<8x8xf32>
    %107 = vector.extract_strided_slice %32 {offsets = [8, 0], sizes = [8, 8], strides = [1, 1]} : vector<16x32xf32> to vector<8x8xf32>
    %108 = vector.extract_strided_slice %33 {offsets = [8, 0], sizes = [8, 8], strides = [1, 1]} : vector<16x32xf32> to vector<8x8xf32>
    %cst_35 = arith.constant dense<0.000000e+00> : vector<8x8xf32>
    %109 = tpu.matmul %106, %107, %cst_35 {dimension_numbers = #tpu.dot_dimension_numbers<[1], [1], [0], [0], [0, 0, 1, 0], [], []>} : vector<8x8xf32>, vector<8x8xf32>, vector<8x8xf32> -> vector<8x8xf32>
    %cst_36 = arith.constant -1.000000e+30 : f32
    %110 = vector.broadcast %cst_36 : f32 to vector<8x8xf32>
    %111 = arith.select %36, %109, %110 : vector<8x8xi1>, vector<8x8xf32>
    %cst_37 = arith.constant dense<0xFF800000> : vector<8xf32>
    %112 = vector.multi_reduction <maximumf>, %111, %cst_37 [1] : vector<8x8xf32> to vector<8xf32>
    %113 = vector.shape_cast %112 : vector<8xf32> to vector<8x1xf32>
    %114 = vector.broadcast %113 : vector<8x1xf32> to vector<8x8xf32>
    %115 = arith.subf %111, %114 : vector<8x8xf32>
    %116 = math.exp %115 : vector<8x8xf32>
    %cst_38 = arith.constant dense<0.000000e+00> : vector<8xf32>
    %117 = vector.multi_reduction <add>, %116, %cst_38 [1] : vector<8x8xf32> to vector<8xf32>
    %118 = vector.shape_cast %117 : vector<8xf32> to vector<8x1xf32>
    %cst_39 = arith.constant dense<0.000000e+00> : vector<8x8xf32>
    %119 = tpu.matmul %116, %108, %cst_39 {dimension_numbers = #tpu.dot_dimension_numbers<[1], [0], [0], [1], [0, 0, 1, 1], [], []>} : vector<8x8xf32>, vector<8x8xf32>, vector<8x8xf32> -> vector<8x8xf32>
    %120 = tpu.reciprocal %118 : vector<8x1xf32> -> vector<8x1xf32>
    %121 = vector.broadcast %120 : vector<8x1xf32> to vector<8x8xf32>
    %122 = arith.mulf %119, %121 : vector<8x8xf32>
    %123 = vector.extract_strided_slice %31 {offsets = [8, 8], sizes = [8, 8], strides = [1, 1]} : vector<16x32xf32> to vector<8x8xf32>
    %124 = vector.extract_strided_slice %32 {offsets = [8, 8], sizes = [8, 8], strides = [1, 1]} : vector<16x32xf32> to vector<8x8xf32>
    %125 = vector.extract_strided_slice %33 {offsets = [8, 8], sizes = [8, 8], strides = [1, 1]} : vector<16x32xf32> to vector<8x8xf32>
    %cst_40 = arith.constant dense<0.000000e+00> : vector<8x8xf32>
    %126 = tpu.matmul %123, %124, %cst_40 {dimension_numbers = #tpu.dot_dimension_numbers<[1], [1], [0], [0], [0, 0, 1, 0], [], []>} : vector<8x8xf32>, vector<8x8xf32>, vector<8x8xf32> -> vector<8x8xf32>
    %cst_41 = arith.constant -1.000000e+30 : f32
    %127 = vector.broadcast %cst_41 : f32 to vector<8x8xf32>
    %128 = arith.select %36, %126, %127 : vector<8x8xi1>, vector<8x8xf32>
    %cst_42 = arith.constant dense<0xFF800000> : vector<8xf32>
    %129 = vector.multi_reduction <maximumf>, %128, %cst_42 [1] : vector<8x8xf32> to vector<8xf32>
    %130 = vector.shape_cast %129 : vector<8xf32> to vector<8x1xf32>
    %131 = vector.broadcast %130 : vector<8x1xf32> to vector<8x8xf32>
    %132 = arith.subf %128, %131 : vector<8x8xf32>
    %133 = math.exp %132 : vector<8x8xf32>
    %cst_43 = arith.constant dense<0.000000e+00> : vector<8xf32>
    %134 = vector.multi_reduction <add>, %133, %cst_43 [1] : vector<8x8xf32> to vector<8xf32>
    %135 = vector.shape_cast %134 : vector<8xf32> to vector<8x1xf32>
    %cst_44 = arith.constant dense<0.000000e+00> : vector<8x8xf32>
    %136 = tpu.matmul %133, %125, %cst_44 {dimension_numbers = #tpu.dot_dimension_numbers<[1], [0], [0], [1], [0, 0, 1, 1], [], []>} : vector<8x8xf32>, vector<8x8xf32>, vector<8x8xf32> -> vector<8x8xf32>
    %137 = tpu.reciprocal %135 : vector<8x1xf32> -> vector<8x1xf32>
    %138 = vector.broadcast %137 : vector<8x1xf32> to vector<8x8xf32>
    %139 = arith.mulf %136, %138 : vector<8x8xf32>
    %140 = vector.extract_strided_slice %31 {offsets = [8, 16], sizes = [8, 8], strides = [1, 1]} : vector<16x32xf32> to vector<8x8xf32>
    %141 = vector.extract_strided_slice %32 {offsets = [8, 16], sizes = [8, 8], strides = [1, 1]} : vector<16x32xf32> to vector<8x8xf32>
    %142 = vector.extract_strided_slice %33 {offsets = [8, 16], sizes = [8, 8], strides = [1, 1]} : vector<16x32xf32> to vector<8x8xf32>
    %cst_45 = arith.constant dense<0.000000e+00> : vector<8x8xf32>
    %143 = tpu.matmul %140, %141, %cst_45 {dimension_numbers = #tpu.dot_dimension_numbers<[1], [1], [0], [0], [0, 0, 1, 0], [], []>} : vector<8x8xf32>, vector<8x8xf32>, vector<8x8xf32> -> vector<8x8xf32>
    %cst_46 = arith.constant -1.000000e+30 : f32
    %144 = vector.broadcast %cst_46 : f32 to vector<8x8xf32>
    %145 = arith.select %36, %143, %144 : vector<8x8xi1>, vector<8x8xf32>
    %cst_47 = arith.constant dense<0xFF800000> : vector<8xf32>
    %146 = vector.multi_reduction <maximumf>, %145, %cst_47 [1] : vector<8x8xf32> to vector<8xf32>
    %147 = vector.shape_cast %146 : vector<8xf32> to vector<8x1xf32>
    %148 = vector.broadcast %147 : vector<8x1xf32> to vector<8x8xf32>
    %149 = arith.subf %145, %148 : vector<8x8xf32>
    %150 = math.exp %149 : vector<8x8xf32>
    %cst_48 = arith.constant dense<0.000000e+00> : vector<8xf32>
    %151 = vector.multi_reduction <add>, %150, %cst_48 [1] : vector<8x8xf32> to vector<8xf32>
    %152 = vector.shape_cast %151 : vector<8xf32> to vector<8x1xf32>
    %cst_49 = arith.constant dense<0.000000e+00> : vector<8x8xf32>
    %153 = tpu.matmul %150, %142, %cst_49 {dimension_numbers = #tpu.dot_dimension_numbers<[1], [0], [0], [1], [0, 0, 1, 1], [], []>} : vector<8x8xf32>, vector<8x8xf32>, vector<8x8xf32> -> vector<8x8xf32>
    %154 = tpu.reciprocal %152 : vector<8x1xf32> -> vector<8x1xf32>
    %155 = vector.broadcast %154 : vector<8x1xf32> to vector<8x8xf32>
    %156 = arith.mulf %153, %155 : vector<8x8xf32>
    %157 = vector.extract_strided_slice %31 {offsets = [8, 24], sizes = [8, 8], strides = [1, 1]} : vector<16x32xf32> to vector<8x8xf32>
    %158 = vector.extract_strided_slice %32 {offsets = [8, 24], sizes = [8, 8], strides = [1, 1]} : vector<16x32xf32> to vector<8x8xf32>
    %159 = vector.extract_strided_slice %33 {offsets = [8, 24], sizes = [8, 8], strides = [1, 1]} : vector<16x32xf32> to vector<8x8xf32>
    %cst_50 = arith.constant dense<0.000000e+00> : vector<8x8xf32>
    %160 = tpu.matmul %157, %158, %cst_50 {dimension_numbers = #tpu.dot_dimension_numbers<[1], [1], [0], [0], [0, 0, 1, 0], [], []>} : vector<8x8xf32>, vector<8x8xf32>, vector<8x8xf32> -> vector<8x8xf32>
    %cst_51 = arith.constant -1.000000e+30 : f32
    %161 = vector.broadcast %cst_51 : f32 to vector<8x8xf32>
    %162 = arith.select %36, %160, %161 : vector<8x8xi1>, vector<8x8xf32>
    %cst_52 = arith.constant dense<0xFF800000> : vector<8xf32>
    %163 = vector.multi_reduction <maximumf>, %162, %cst_52 [1] : vector<8x8xf32> to vector<8xf32>
    %164 = vector.shape_cast %163 : vector<8xf32> to vector<8x1xf32>
    %165 = vector.broadcast %164 : vector<8x1xf32> to vector<8x8xf32>
    %166 = arith.subf %162, %165 : vector<8x8xf32>
    %167 = math.exp %166 : vector<8x8xf32>
    %cst_53 = arith.constant dense<0.000000e+00> : vector<8xf32>
    %168 = vector.multi_reduction <add>, %167, %cst_53 [1] : vector<8x8xf32> to vector<8xf32>
    %169 = vector.shape_cast %168 : vector<8xf32> to vector<8x1xf32>
    %cst_54 = arith.constant dense<0.000000e+00> : vector<8x8xf32>
    %170 = tpu.matmul %167, %159, %cst_54 {dimension_numbers = #tpu.dot_dimension_numbers<[1], [0], [0], [1], [0, 0, 1, 1], [], []>} : vector<8x8xf32>, vector<8x8xf32>, vector<8x8xf32> -> vector<8x8xf32>
    %171 = tpu.reciprocal %169 : vector<8x1xf32> -> vector<8x1xf32>
    %172 = vector.broadcast %171 : vector<8x1xf32> to vector<8x8xf32>
    %173 = arith.mulf %170, %172 : vector<8x8xf32>
    %174 = tpu.concatenate %122, %139, %156, %173 in 1 : vector<8x8xf32>, vector<8x8xf32>, vector<8x8xf32>, vector<8x8xf32> -> vector<8x32xf32>
    %175 = tpu.concatenate %105, %174 in 0 : vector<8x32xf32>, vector<8x32xf32> -> vector<16x32xf32>
    %c0_55 = arith.constant 0 : index
    %c0_56 = arith.constant 0 : index
    %176 = vector.load %arg4[%c0_55, %c0_56] : memref<32x32xf32, #tpu.memory_space<vmem>>, vector<32x32xf32>
    %cst_57 = arith.constant dense<0.000000e+00> : vector<16x32xf32>
    %177 = tpu.matmul %175, %176, %cst_57 {dimension_numbers = #tpu.dot_dimension_numbers<[1], [0], [0], [1], [0, 0, 1, 1], [], []>} : vector<16x32xf32>, vector<32x32xf32>, vector<16x32xf32> -> vector<16x32xf32>
    %c0_58 = arith.constant 0 : index
    %c0_59 = arith.constant 0 : index
    %178 = vector.load %arg5[%c0_58, %c0_59] : memref<1x32xf32, #tpu.memory_space<vmem>>, vector<1x32xf32>
    %179 = vector.broadcast %178 : vector<1x32xf32> to vector<16x32xf32>
    %180 = arith.addf %177, %179 : vector<16x32xf32>
    %181 = arith.addf %25, %180 : vector<16x32xf32>
    %c0_60 = arith.constant 0 : index
    %c0_61 = arith.constant 0 : index
    %182 = vector.load %arg8[%c0_60, %c0_61] : memref<1x32xf32, #tpu.memory_space<vmem>>, vector<1x32xf32>
    %c0_62 = arith.constant 0 : index
    %c0_63 = arith.constant 0 : index
    %183 = vector.load %arg9[%c0_62, %c0_63] : memref<1x32xf32, #tpu.memory_space<vmem>>, vector<1x32xf32>
    %cst_64 = arith.constant dense<0.000000e+00> : vector<16xf32>
    %184 = vector.multi_reduction <add>, %181, %cst_64 [1] : vector<16x32xf32> to vector<16xf32>
    %185 = vector.shape_cast %184 : vector<16xf32> to vector<16x1xf32>
    %cst_65 = arith.constant 3.200000e+01 : f32
    %186 = vector.broadcast %cst_65 : f32 to vector<16x1xf32>
    %187 = arith.divf %185, %186 : vector<16x1xf32>
    %188 = vector.broadcast %187 : vector<16x1xf32> to vector<16x32xf32>
    %189 = arith.subf %181, %188 : vector<16x32xf32>
    %190 = arith.mulf %189, %189 : vector<16x32xf32>
    %cst_66 = arith.constant dense<0.000000e+00> : vector<16xf32>
    %191 = vector.multi_reduction <add>, %190, %cst_66 [1] : vector<16x32xf32> to vector<16xf32>
    %192 = vector.shape_cast %191 : vector<16xf32> to vector<16x1xf32>
    %cst_67 = arith.constant 3.200000e+01 : f32
    %193 = vector.broadcast %cst_67 : f32 to vector<16x1xf32>
    %194 = arith.divf %192, %193 : vector<16x1xf32>
    %195 = vector.broadcast %187 : vector<16x1xf32> to vector<16x32xf32>
    %196 = arith.subf %181, %195 : vector<16x32xf32>
    %cst_68 = arith.constant 9.99999974E-6 : f32
    %197 = vector.broadcast %cst_68 : f32 to vector<16x1xf32>
    %198 = arith.addf %194, %197 : vector<16x1xf32>
    %199 = math.rsqrt %198 : vector<16x1xf32>
    %200 = vector.broadcast %199 : vector<16x1xf32> to vector<16x32xf32>
    %201 = arith.mulf %196, %200 : vector<16x32xf32>
    %202 = vector.broadcast %182 : vector<1x32xf32> to vector<16x32xf32>
    %203 = arith.mulf %201, %202 : vector<16x32xf32>
    %204 = vector.broadcast %183 : vector<1x32xf32> to vector<16x32xf32>
    %205 = arith.addf %203, %204 : vector<16x32xf32>
    %c0_69 = arith.constant 0 : index
    %c0_70 = arith.constant 0 : index
    %206 = vector.load %arg10[%c0_69, %c0_70] : memref<32x128xf32, #tpu.memory_space<vmem>>, vector<32x128xf32>
    %cst_71 = arith.constant dense<0.000000e+00> : vector<16x128xf32>
    %207 = tpu.matmul %205, %206, %cst_71 {dimension_numbers = #tpu.dot_dimension_numbers<[1], [0], [0], [1], [0, 0, 1, 1], [], []>} : vector<16x32xf32>, vector<32x128xf32>, vector<16x128xf32> -> vector<16x128xf32>
    %c0_72 = arith.constant 0 : index
    %c0_73 = arith.constant 0 : index
    %208 = vector.load %arg11[%c0_72, %c0_73] : memref<1x128xf32, #tpu.memory_space<vmem>>, vector<1x128xf32>
    %209 = vector.broadcast %208 : vector<1x128xf32> to vector<16x128xf32>
    %210 = arith.addf %207, %209 : vector<16x128xf32>
    %cst_74 = arith.constant 5.000000e-01 : f32
    %211 = vector.broadcast %cst_74 : f32 to vector<16x128xf32>
    %212 = arith.mulf %211, %210 : vector<16x128xf32>
    %cst_75 = arith.constant 0.707106769 : f32
    %213 = vector.broadcast %cst_75 : f32 to vector<16x128xf32>
    %214 = arith.mulf %210, %213 : vector<16x128xf32>
    %215 = math.erf %214 : vector<16x128xf32>
    %cst_76 = arith.constant 1.000000e+00 : f32
    %216 = vector.broadcast %cst_76 : f32 to vector<16x128xf32>
    %217 = arith.addf %216, %215 : vector<16x128xf32>
    %218 = arith.mulf %212, %217 : vector<16x128xf32>
    %c0_77 = arith.constant 0 : index
    %c0_78 = arith.constant 0 : index
    %219 = vector.load %arg12[%c0_77, %c0_78] : memref<128x32xf32, #tpu.memory_space<vmem>>, vector<128x32xf32>
    %cst_79 = arith.constant dense<0.000000e+00> : vector<16x32xf32>
    %220 = tpu.matmul %218, %219, %cst_79 {dimension_numbers = #tpu.dot_dimension_numbers<[1], [0], [0], [1], [0, 0, 1, 1], [], []>} : vector<16x128xf32>, vector<128x32xf32>, vector<16x32xf32> -> vector<16x32xf32>
    %c0_80 = arith.constant 0 : index
    %c0_81 = arith.constant 0 : index
    %221 = vector.load %arg13[%c0_80, %c0_81] : memref<1x32xf32, #tpu.memory_space<vmem>>, vector<1x32xf32>
    %222 = vector.broadcast %221 : vector<1x32xf32> to vector<16x32xf32>
    %223 = arith.addf %220, %222 : vector<16x32xf32>
    %224 = arith.addf %181, %223 : vector<16x32xf32>
    %225 = vector.shape_cast %224 : vector<16x32xf32> to vector<2x8x32xf32>
    %c0_82 = arith.constant 0 : index
    %c0_83 = arith.constant 0 : index
    %c0_84 = arith.constant 0 : index
    %226 = vector.load %arg14[%c0_82, %c0_83, %c0_84] : memref<2x8x32xf32, #tpu.memory_space<vmem>>, vector<2x8x32xf32>
    tpu.vector_store %arg14[%c0_82, %c0_83, %c0_84], %225 {strides = array<i32>} : memref<2x8x32xf32, #tpu.memory_space<vmem>>, vector<2x8x32xf32>,
    return
  }
  func.func @transform_0(%arg0: i32) -> (i32, i32, i32) {
    %c0_i32 = arith.constant 0 : i32
    %c0_i32_0 = arith.constant 0 : i32
    %c0_i32_1 = arith.constant 0 : i32
    return %arg0, %c0_i32, %c0_i32_0 : i32, i32, i32
  }
  func.func @transform_1(%arg0: i32) -> (i32, i32) {
    %c0_i32 = arith.constant 0 : i32
    %c0_i32_0 = arith.constant 0 : i32
    %c0_i32_1 = arith.constant 0 : i32
    return %c0_i32, %c0_i32_0 : i32, i32
  }
  func.func @transform_2(%arg0: i32) -> (i32, i32) {
    %c0_i32 = arith.constant 0 : i32
    %c0_i32_0 = arith.constant 0 : i32
    %c0_i32_1 = arith.constant 0 : i32
    return %c0_i32, %c0_i32_0 : i32, i32
  }
  func.func @transform_3(%arg0: i32) -> (i32, i32) {
    %c0_i32 = arith.constant 0 : i32
    %c0_i32_0 = arith.constant 0 : i32
    %c0_i32_1 = arith.constant 0 : i32
    return %c0_i32, %c0_i32_0 : i32, i32
  }
  func.func @transform_4(%arg0: i32) -> (i32, i32) {
    %c0_i32 = arith.constant 0 : i32
    %c0_i32_0 = arith.constant 0 : i32
    %c0_i32_1 = arith.constant 0 : i32
    return %c0_i32, %c0_i32_0 : i32, i32
  }
  func.func @transform_5(%arg0: i32) -> (i32, i32) {
    %c0_i32 = arith.constant 0 : i32
    %c0_i32_0 = arith.constant 0 : i32
    %c0_i32_1 = arith.constant 0 : i32
    return %c0_i32, %c0_i32_0 : i32, i32
  }
  func.func @transform_6(%arg0: i32) -> (i32, i32) {
    %c0_i32 = arith.constant 0 : i32
    %c0_i32_0 = arith.constant 0 : i32
    %c0_i32_1 = arith.constant 0 : i32
    return %c0_i32, %c0_i32_0 : i32, i32
  }
  func.func @transform_7(%arg0: i32) -> (i32, i32) {
    %c0_i32 = arith.constant 0 : i32
    %c0_i32_0 = arith.constant 0 : i32
    %c0_i32_1 = arith.constant 0 : i32
    return %c0_i32, %c0_i32_0 : i32, i32
  }
  func.func @transform_8(%arg0: i32) -> (i32, i32) {
    %c0_i32 = arith.constant 0 : i32
    %c0_i32_0 = arith.constant 0 : i32
    %c0_i32_1 = arith.constant 0 : i32
    return %c0_i32, %c0_i32_0 : i32, i32
  }
  func.func @transform_9(%arg0: i32) -> (i32, i32) {
    %c0_i32 = arith.constant 0 : i32
    %c0_i32_0 = arith.constant 0 : i32
    %c0_i32_1 = arith.constant 0 : i32
    return %c0_i32, %c0_i32_0 : i32, i32
  }
  func.func @transform_10(%arg0: i32) -> (i32, i32) {
    %c0_i32 = arith.constant 0 : i32
    %c0_i32_0 = arith.constant 0 : i32
    %c0_i32_1 = arith.constant 0 : i32
    return %c0_i32, %c0_i32_0 : i32, i32
  }
  func.func @transform_11(%arg0: i32) -> (i32, i32) {
    %c0_i32 = arith.constant 0 : i32
    %c0_i32_0 = arith.constant 0 : i32
    %c0_i32_1 = arith.constant 0 : i32
    return %c0_i32, %c0_i32_0 : i32, i32
  }
  func.func @transform_12(%arg0: i32) -> (i32, i32) {
    %c0_i32 = arith.constant 0 : i32
    %c0_i32_0 = arith.constant 0 : i32
    %c0_i32_1 = arith.constant 0 : i32
    return %c0_i32, %c0_i32_0 : i32, i32
  }
  func.func @transform_13(%arg0: i32) -> (i32, i32, i32) {
    %c0_i32 = arith.constant 0 : i32
    %c0_i32_0 = arith.constant 0 : i32
    %c0_i32_1 = arith.constant 0 : i32
    return %arg0, %c0_i32, %c0_i32_0 : i32, i32, i32
  }
}

</mosaic_0001>

<llo_original>
// kernel: tpu_custom_call.1
$region0: #{tpu_custom_call.1}
  #allocation0 [shape = 'u32[]', space=smem, size = 0x4, offset = 0x4, fixed_abs, tag = 'smem constant byte address 0x4 - core index']
  #allocation1 [shape = 'u32[144,128]{1,0:T(1,128)}', space=vmem, size = 0x12000, scoped, tag = 'internal scratch']
  %s0 = inlined_call_operand.vmem [shape: f32[2,8,32], index: 0, kind: input, shape index: {}]
  %s1 = inlined_call_operand.vmem [shape: f32[32,96], index: 1, kind: input, shape index: {}]
  %s2 = inlined_call_operand.vmem [shape: f32[1,96], index: 2, kind: input, shape index: {}]
  %s3 = inlined_call_operand.vmem [shape: f32[32,32], index: 3, kind: input, shape index: {}]
  %s4 = inlined_call_operand.vmem [shape: f32[1,32], index: 4, kind: input, shape index: {}]
  %s5 = inlined_call_operand.vmem [shape: f32[1,32], index: 5, kind: input, shape index: {}]
  %s6 = inlined_call_operand.vmem [shape: f32[1,32], index: 6, kind: input, shape index: {}]
  %s7 = inlined_call_operand.vmem [shape: f32[1,32], index: 7, kind: input, shape index: {}]
  %s8 = inlined_call_operand.vmem [shape: f32[1,32], index: 8, kind: input, shape index: {}]
  %s9 = inlined_call_operand.vmem [shape: f32[32,128], index: 9, kind: input, shape index: {}]
  %s10 = inlined_call_operand.vmem [shape: f32[1,128], index: 10, kind: input, shape index: {}]
  %s11 = inlined_call_operand.vmem [shape: f32[128,32], index: 11, kind: input, shape index: {}]
  %s12 = inlined_call_operand.vmem [shape: f32[1,32], index: 12, kind: input, shape index: {}]
  %s13 = inlined_call_operand.hbm [shape: f32[2,8,32], index: 13, kind: output, shape index: {}]
  %s14 = sld [smem:[#allocation0]]
  $region62: #{tpu_custom_call.1} parent=0
    _
  %s16 = ssub.s32 1, %s14
  %s17 = scalar_select 0, %s16, %s14
  $region1: #{tpu_custom_call.1} parent=0
    #allocation2 [shape = 'u8[8192]{0}', space=vmem, size = 0x2000, scoped, tag = 'output window, operand 0, single buffered']
    #allocation3 [shape = 's32[1]{0}', space=sflag, size = 0x4, scoped, tag = 'scoped memory for tpu_custom_call.1']
    %18 = vsyncpa [#allocation3], 0
    // Predicated region
    $region2: #{tpu_custom_call.1} parent=1 // pred_check
      _
    $region3: #{tpu_custom_call.1} parent=1 // pred_check_branch
      %20 = sbr.rel (0) target = $region5
    $region4: #{tpu_custom_call.1} parent=1 // pred_region
      _
    $region5: #{tpu_custom_call.1} parent=1 // pred_fallthru
      _
    // Predicated region
    $region6: #{tpu_custom_call.1} parent=1 // pred_check
      _
    $region7: #{tpu_custom_call.1} parent=1 // pred_check_branch
      %22 = sbr.rel (0) target = $region9
    $region8: #{tpu_custom_call.1} parent=1 // pred_region
      _
    $region9: #{tpu_custom_call.1} parent=1 // pred_fallthru
      _
    // Predicated region
    $region10: #{tpu_custom_call.1} parent=1 // pred_check
      _
    $region11: #{tpu_custom_call.1} parent=1 // pred_check_branch
      %24 = sbr.rel (0) target = $region13
    $region12: #{tpu_custom_call.1} parent=1 // pred_region
      _
    $region13: #{tpu_custom_call.1} parent=1 // pred_fallthru
      _
    // Predicated region
    $region14: #{tpu_custom_call.1} parent=1 // pred_check
      _
    $region15: #{tpu_custom_call.1} parent=1 // pred_check_branch
      %26 = sbr.rel (0) target = $region17
    $region16: #{tpu_custom_call.1} parent=1 // pred_region
      _
    $region17: #{tpu_custom_call.1} parent=1 // pred_fallthru
      _
    // Predicated region
    $region18: #{tpu_custom_call.1} parent=1 // pred_check
      _
    $region19: #{tpu_custom_call.1} parent=1 // pred_check_branch
      %28 = sbr.rel (0) target = $region21
    $region20: #{tpu_custom_call.1} parent=1 // pred_region
      _
    $region21: #{tpu_custom_call.1} parent=1 // pred_fallthru
      _
    // Predicated region
    $region22: #{tpu_custom_call.1} parent=1 // pred_check
      _
    $region23: #{tpu_custom_call.1} parent=1 // pred_check_branch
      %30 = sbr.rel (0) target = $region25
    $region24: #{tpu_custom_call.1} parent=1 // pred_region
      _
    $region25: #{tpu_custom_call.1} parent=1 // pred_fallthru
      _
    // Predicated region
    $region26: #{tpu_custom_call.1} parent=1 // pred_check
      _
    $region27: #{tpu_custom_call.1} parent=1 // pred_check_branch
      %32 = sbr.rel (0) target = $region29
    $region28: #{tpu_custom_call.1} parent=1 // pred_region
      _
    $region29: #{tpu_custom_call.1} parent=1 // pred_fallthru
      _
    // Predicated region
    $region30: #{tpu_custom_call.1} parent=1 // pred_check
      _
    $region31: #{tpu_custom_call.1} parent=1 // pred_check_branch
      %34 = sbr.rel (0) target = $region33
    $region32: #{tpu_custom_call.1} parent=1 // pred_region
      _
    $region33: #{tpu_custom_call.1} parent=1 // pred_fallthru
      _
    // Predicated region
    $region34: #{tpu_custom_call.1} parent=1 // pred_check
      _
    $region35: #{tpu_custom_call.1} parent=1 // pred_check_branch
      %36 = sbr.rel (0) target = $region37
    $region36: #{tpu_custom_call.1} parent=1 // pred_region
      _
    $region37: #{tpu_custom_call.1} parent=1 // pred_fallthru
      _
    // Predicated region
    $region38: #{tpu_custom_call.1} parent=1 // pred_check
      _
    $region39: #{tpu_custom_call.1} parent=1 // pred_check_branch
      %38 = sbr.rel (0) target = $region41
    $region40: #{tpu_custom_call.1} parent=1 // pred_region
      _
    $region41: #{tpu_custom_call.1} parent=1 // pred_fallthru
      _
    // Predicated region
    $region42: #{tpu_custom_call.1} parent=1 // pred_check
      _
    $region43: #{tpu_custom_call.1} parent=1 // pred_check_branch
      %40 = sbr.rel (0) target = $region45
    $region44: #{tpu_custom_call.1} parent=1 // pred_region
      _
    $region45: #{tpu_custom_call.1} parent=1 // pred_fallthru
      _
    // Predicated region
    $region46: #{tpu_custom_call.1} parent=1 // pred_check
      _
    $region47: #{tpu_custom_call.1} parent=1 // pred_check_branch
      %42 = sbr.rel (0) target = $region49
    $region48: #{tpu_custom_call.1} parent=1 // pred_region
      _
    $region49: #{tpu_custom_call.1} parent=1 // pred_fallthru
      _
    // Predicated region
    $region50: #{tpu_custom_call.1} parent=1 // pred_check
      _
    $region51: #{tpu_custom_call.1} parent=1 // pred_check_branch
      %44 = sbr.rel (0) target = $region53
    $region52: #{tpu_custom_call.1} parent=1 // pred_region
      _
    $region53: #{tpu_custom_call.1} parent=1 // pred_fallthru
      _
    %v45 = vld [vmem:[%s0] sm:$0xff]
    %v46 = vld [vmem:[%s0 + $0x8] sm:$0xff]
    %v47 = vld [vmem:[%s5] sm:$0x1]
    %v48 = vld [vmem:[%s6] sm:$0x1]
    %vm49 = vcmask 261120
    %v50 = vsel %vm49, %v45, 0.0
    %51 = vadd.xlane.f32.xlu0 %v50
    %v52 = vpop.xlane.xlu0 %51
    %v53 = vsel %vm49, %v46, 0.0
    %54 = vadd.xlane.f32.xlu0 %v53
    %v55 = vpop.xlane.xlu0 %54
    %v56 = vrcp.pop 32.0
    %v57 = vmul.f32 %v52, %v56
    %v58 = vmul.f32 %v55, %v56
    %v59 = vsub.f32 %v45, %v57
    %v60 = vsub.f32 %v46, %v58
    %v61 = vmul.f32 %v59, %v59
    %v62 = vmul.f32 %v60, %v60
    %v63 = vsel %vm49, %v61, 0.0
    %64 = vadd.xlane.f32.xlu0 %v63
    %v65 = vpop.xlane.xlu0 %64
    %v66 = vsel %vm49, %v62, 0.0
    %67 = vadd.xlane.f32.xlu0 %v66
    %v68 = vpop.xlane.xlu0 %67
    %v69 = vmul.f32 %v65, %v56
    %v70 = vmul.f32 %v68, %v56
    %v71 = vadd.f32 %v69, 1e-05
    %v72 = vadd.f32 %v70, 1e-05
    %v73 = vrsqrt.pop %v71
    %v74 = vrsqrt.pop %v72
    %v75 = vmul.f32 %v59, %v73
    %v76 = vmul.f32 %v60, %v74
    %v78 = vlaneseq
    %v79 = vshrl.u32 %v78, 7
    %v80 = vsub.s32 0, %v79
    %v81 = vrot.slane %v47, %v80
    %v83 = vmul.f32 %v75, %v81
    %v84 = vmul.f32 %v76, %v81
    %v86 = vlaneseq
    %v87 = vshrl.u32 %v86, 7
    %v88 = vsub.s32 0, %v87
    %v89 = vrot.slane %v48, %v88
    %v91 = vadd.f32 %v83, %v89
    %v92 = vadd.f32 %v84, %v89
    %v93 = vld [vmem:[%s1] sm:$0xff]
    %v94 = vld [vmem:[%s1 + $0x8] sm:$0xff]
    %v95 = vld [vmem:[%s1 + $0x10] sm:$0xff]
    %v96 = vld [vmem:[%s1 + $0x18] sm:$0xff]
    %v97 = vld [vmem:[%s2] sm:$0x1]
    %v99 = vlaneseq
    %v100 = vshrl.u32 %v99, 7
    %v101 = vsub.s32 0, %v100
    %v102 = vrot.slane %v97, %v101
    %v105 = vsel %vm49, %v91, 0
    %v108 = vsel %vm49, %v92, 0
    %110 = vmatprep.subr.mxu0 0.0
    %111 = vmatpush1.msra.mxu0 0.0
    %112 = vmatprep.subr.mxu0 0.0
    %113 = vmatpush1.msra.mxu0 0.0
    %114 = vmatprep.subr.mxu0 0.0
    %115 = vmatpush1.msra.mxu0 0.0
    %116 = vmatprep.subr.mxu0 0.0
    %117 = vmatpush1.msra.mxu0 0.0
    %118 = vmatprep.subr.mxu0 0.0
    %119 = vmatpush1.msra.mxu0 0.0
    %120 = vmatprep.subr.mxu0 0.0
    %121 = vmatpush1.msra.mxu0 0.0
    %122 = vmatprep.subr.mxu0 0.0
    %123 = vmatpush1.msra.mxu0 0.0
    %124 = vmatprep.subr.mxu0 0.0
    %125 = vmatpush1.msra.mxu0 0.0
    %126 = vmatprep.subr.mxu0 0.0
    %127 = vmatpush1.msra.mxu0 0.0
    %128 = vmatprep.subr.mxu0 0.0
    %129 = vmatpush1.msra.mxu0 0.0
    %130 = vmatprep.subr.mxu0 0.0
    %131 = vmatpush1.msra.mxu0 0.0
    %132 = vmatprep.subr.mxu0 0.0
    %133 = vmatpush1.msra.mxu0 0.0
    %134 = vmatprep.subr.mxu0 0.0
    %135 = vmatpush1.msra.mxu0 %v96
    %136 = vmatprep.subr.mxu0 0.0
    %137 = vmatpush1.msra.mxu0 %v95
    %138 = vmatprep.subr.mxu0 0.0
    %139 = vmatpush1.msra.mxu0 %v94
    %140 = vmatprep.subr.mxu0 0.0
    %141 = vmatpush1.msra.mxu0 %v93
    %142 = vmatprep.subr.mxu0 0.0
    %143 = vmatpush2.msra.mxu0 0.0
    %144 = vmatprep.subr.mxu0 0.0
    %145 = vmatpush2.msra.mxu0 0.0
    %146 = vmatprep.subr.mxu0 0.0
    %147 = vmatpush2.msra.mxu0 0.0
    %148 = vmatprep.subr.mxu0 0.0
    %149 = vmatpush2.msra.mxu0 0.0
    %150 = vmatprep.subr.mxu0 0.0
    %151 = vmatpush2.msra.mxu0 0.0
    %152 = vmatprep.subr.mxu0 0.0
    %153 = vmatpush2.msra.mxu0 0.0
    %154 = vmatprep.subr.mxu0 0.0
    %155 = vmatpush2.msra.mxu0 0.0
    %156 = vmatprep.subr.mxu0 0.0
    %157 = vmatpush2.msra.mxu0 0.0
    %158 = vmatprep.subr.mxu0 0.0
    %159 = vmatpush2.msra.mxu0 0.0
    %160 = vmatprep.subr.mxu0 0.0
    %161 = vmatpush2.msra.mxu0 0.0
    %162 = vmatprep.subr.mxu0 0.0
    %163 = vmatpush2.msra.mxu0 0.0
    %164 = vmatprep.subr.mxu0 0.0
    %165 = vmatpush2.msra.mxu0 0.0
    %166 = vmatprep.subr.mxu0 0.0
    %167 = vmatpush2.msra.mxu0 0.0
    %168 = vmatprep.subr.mxu0 0.0
    %169 = vmatpush2.msra.mxu0 0.0
    %170 = vmatprep.subr.mxu0 0.0
    %171 = vmatpush2.msra.mxu0 0.0
    %172 = vmatprep.subr.mxu0 0.0
    %173 = vmatpush2.msra.mxu0 0.0
    %174 = vmatprep.mubr.f32.mxu0 0.0
    %175 = vmatmul.mubr.f32.gmra.mxu0 %v105
    %v176 = vpop.f32.mrf.mxu0
    %v177 = vadd.f32 %v102, %v176
    %v178 = vpop.f32.mrf.mxu0
    %179 = vmatprep.mubr.f32.mxu0 0.0
    %180 = vmatmul.mubr.f32.gmra.mxu0 %v108
    %v181 = vpop.f32.mrf.mxu0
    %v182 = vadd.f32 %v102, %v181
    %v183 = vpop.f32.mrf.mxu0
    %184 = vdwg.mxu0
    %v185 = vlaneseq
    %v186 = vshrl.u32 %v185, 7
    %v187 = vlaneseq
    %v188 = vand.u32 %v187, 127
    %vm189 = vcmp.le.s32.totalorder %v188, %v186
    %191 = vrot.lane.b32.xlu0 %v177, 96
    %v192 = vpop.permute.xlu0 %191
    %vm193 = vcmask 64512
    %v194 = vsel %vm193, %v177, 0
    %v196 = vsel %vm193, %v192, 0
    %198 = vmatprep.subr.mxu0 0.0
    %199 = vmatpush1.xpose.msra.mxu0 0.0
    %200 = vmatprep.subr.mxu0 0.0
    %201 = vmatpush1.xpose.msra.mxu0 0.0
    %202 = vmatprep.subr.mxu0 0.0
    %203 = vmatpush1.xpose.msra.mxu0 0.0
    %204 = vmatprep.subr.mxu0 0.0
    %205 = vmatpush1.xpose.msra.mxu0 0.0
    %206 = vmatprep.subr.mxu0 0.0
    %207 = vmatpush1.xpose.msra.mxu0 0.0
    %208 = vmatprep.subr.mxu0 0.0
    %209 = vmatpush1.xpose.msra.mxu0 0.0
    %210 = vmatprep.subr.mxu0 0.0
    %211 = vmatpush1.xpose.msra.mxu0 0.0
    %212 = vmatprep.subr.mxu0 0.0
    %213 = vmatpush1.xpose.msra.mxu0 0.0
    %214 = vmatprep.subr.mxu0 0.0
    %215 = vmatpush1.xpose.msra.mxu0 0.0
    %216 = vmatprep.subr.mxu0 0.0
    %217 = vmatpush1.xpose.msra.mxu0 0.0
    %218 = vmatprep.subr.mxu0 0.0
    %219 = vmatpush1.xpose.msra.mxu0 0.0
    %220 = vmatprep.subr.mxu0 0.0
    %221 = vmatpush1.xpose.msra.mxu0 0.0
    %222 = vmatprep.subr.mxu0 0.0
    %223 = vmatpush1.xpose.msra.mxu0 0.0
    %224 = vmatprep.subr.mxu0 0.0
    %225 = vmatpush1.xpose.msra.mxu0 0.0
    %226 = vmatprep.subr.mxu0 0.0
    %227 = vmatpush1.xpose.msra.mxu0 0.0
    %228 = vmatprep.subr.mxu0 0.0
    %229 = vmatpush1.xpose.msra.mxu0 %v196
    %230 = vmatprep.subr.mxu0 0.0
    %231 = vmatpush2.xpose.msra.mxu0 0.0
    %232 = vmatprep.subr.mxu0 0.0
    %233 = vmatpush2.xpose.msra.mxu0 0.0
    %234 = vmatprep.subr.mxu0 0.0
    %235 = vmatpush2.xpose.msra.mxu0 0.0
    %236 = vmatprep.subr.mxu0 0.0
    %237 = vmatpush2.xpose.msra.mxu0 0.0
    %238 = vmatprep.subr.mxu0 0.0
    %239 = vmatpush2.xpose.msra.mxu0 0.0
    %240 = vmatprep.subr.mxu0 0.0
    %241 = vmatpush2.xpose.msra.mxu0 0.0
    %242 = vmatprep.subr.mxu0 0.0
    %243 = vmatpush2.xpose.msra.mxu0 0.0
    %244 = vmatprep.subr.mxu0 0.0
    %245 = vmatpush2.xpose.msra.mxu0 0.0
    %246 = vmatprep.subr.mxu0 0.0
    %247 = vmatpush2.xpose.msra.mxu0 0.0
    %248 = vmatprep.subr.mxu0 0.0
    %249 = vmatpush2.xpose.msra.mxu0 0.0
    %250 = vmatprep.subr.mxu0 0.0
    %251 = vmatpush2.xpose.msra.mxu0 0.0
    %252 = vmatprep.subr.mxu0 0.0
    %253 = vmatpush2.xpose.msra.mxu0 0.0
    %254 = vmatprep.subr.mxu0 0.0
    %255 = vmatpush2.xpose.msra.mxu0 0.0
    %256 = vmatprep.subr.mxu0 0.0
    %257 = vmatpush2.xpose.msra.mxu0 0.0
    %258 = vmatprep.subr.mxu0 0.0
    %259 = vmatpush2.xpose.msra.mxu0 0.0
    %260 = vmatprep.subr.mxu0 0.0
    %261 = vmatpush2.xpose.msra.mxu0 0.0
    %262 = vmatprep.mubr.f32.mxu0 0.0
    %263 = vmatmul.mubr.f32.gmra.mxu0 %v194
    %v264 = vpop.f32.mrf.mxu0
    %v265 = vadd.f32 0.0, %v264
    %v266 = vpop.f32.mrf.mxu0
    %267 = vdwg.mxu0
    %v268 = vsel %vm189, %v265, -1e+30
    %v269 = vsel %vm193, %v268, -inf
    %270 = vmax.xlane.f32.xlu0 %v269
    %v271 = vpop.xlane.xlu0 %270
    %v272 = vsub.f32 %v268, %v271
    %v273 = vmul.f32 %v272, 1.442695
    %v274 = vpow.pop %v273
    %v275 = vsel %vm193, %v274, 0.0
    %276 = vadd.xlane.f32.xlu0 %v275
    %v277 = vpop.xlane.xlu0 %276
    %278 = vrot.lane.b32.xlu0 %v177, 64
    %v279 = vpop.permute.xlu0 %278
    %v282 = vsel %vm193, %v274, 0
    %284 = vmatprep.subr.mxu0 0.0
    %285 = vmatpush1.msra.mxu0 0.0
    %286 = vmatprep.subr.mxu0 0.0
    %287 = vmatpush1.msra.mxu0 0.0
    %288 = vmatprep.subr.mxu0 0.0
    %289 = vmatpush1.msra.mxu0 0.0
    %290 = vmatprep.subr.mxu0 0.0
    %291 = vmatpush1.msra.mxu0 0.0
    %292 = vmatprep.subr.mxu0 0.0
    %293 = vmatpush1.msra.mxu0 0.0
    %294 = vmatprep.subr.mxu0 0.0
    %295 = vmatpush1.msra.mxu0 0.0
    %296 = vmatprep.subr.mxu0 0.0
    %297 = vmatpush1.msra.mxu0 0.0
    %298 = vmatprep.subr.mxu0 0.0
    %299 = vmatpush1.msra.mxu0 0.0
    %300 = vmatprep.subr.mxu0 0.0
    %301 = vmatpush1.msra.mxu0 0.0
    %302 = vmatprep.subr.mxu0 0.0
    %303 = vmatpush1.msra.mxu0 0.0
    %304 = vmatprep.subr.mxu0 0.0
    %305 = vmatpush1.msra.mxu0 0.0
    %306 = vmatprep.subr.mxu0 0.0
    %307 = vmatpush1.msra.mxu0 0.0
    %308 = vmatprep.subr.mxu0 0.0
    %309 = vmatpush1.msra.mxu0 0.0
    %310 = vmatprep.subr.mxu0 0.0
    %311 = vmatpush1.msra.mxu0 0.0
    %312 = vmatprep.subr.mxu0 0.0
    %313 = vmatpush1.msra.mxu0 0.0
    %314 = vmatprep.subr.mxu0 0.0
    %315 = vmatpush1.msra.mxu0 %v279
    %316 = vmatprep.subr.mxu0 0.0
    %317 = vmatpush2.msra.mxu0 0.0
    %318 = vmatprep.subr.mxu0 0.0
    %319 = vmatpush2.msra.mxu0 0.0
    %320 = vmatprep.subr.mxu0 0.0
    %321 = vmatpush2.msra.mxu0 0.0
    %322 = vmatprep.subr.mxu0 0.0
    %323 = vmatpush2.msra.mxu0 0.0
    %324 = vmatprep.subr.mxu0 0.0
    %325 = vmatpush2.msra.mxu0 0.0
    %326 = vmatprep.subr.mxu0 0.0
    %327 = vmatpush2.msra.mxu0 0.0
    %328 = vmatprep.subr.mxu0 0.0
    %329 = vmatpush2.msra.mxu0 0.0
    %330 = vmatprep.subr.mxu0 0.0
    %331 = vmatpush2.msra.mxu0 0.0
    %332 = vmatprep.subr.mxu0 0.0
    %333 = vmatpush2.msra.mxu0 0.0
    %334 = vmatprep.subr.mxu0 0.0
    %335 = vmatpush2.msra.mxu0 0.0
    %336 = vmatprep.subr.mxu0 0.0
    %337 = vmatpush2.msra.mxu0 0.0
    %338 = vmatprep.subr.mxu0 0.0
    %339 = vmatpush2.msra.mxu0 0.0
    %340 = vmatprep.subr.mxu0 0.0
    %341 = vmatpush2.msra.mxu0 0.0
    %342 = vmatprep.subr.mxu0 0.0
    %343 = vmatpush2.msra.mxu0 0.0
    %344 = vmatprep.subr.mxu0 0.0
    %345 = vmatpush2.msra.mxu0 0.0
    %346 = vmatprep.subr.mxu0 0.0
    %347 = vmatpush2.msra.mxu0 0.0
    %348 = vmatprep.mubr.f32.mxu0 0.0
    %349 = vmatmul.mubr.f32.gmra.mxu0 %v282
    %v350 = vpop.f32.mrf.mxu0
    %v351 = vadd.f32 0.0, %v350
    %v352 = vpop.f32.mrf.mxu0
    %353 = vdwg.mxu0
    %v354 = vrcp.pop %v277
    %v355 = vmul.f32 %v351, %v354
    %356 = vrot.lane.b32.xlu0 %v177, 120
    %v357 = vpop.permute.xlu0 %356
    %358 = vrot.lane.b32.xlu0 %v177, 88
    %v359 = vpop.permute.xlu0 %358
    %v360 = vsel %vm193, %v357, 0
    %v362 = vsel %vm193, %v359, 0
    %364 = vmatprep.subr.mxu0 0.0
    %365 = vmatpush1.xpose.msra.mxu0 0.0
    %366 = vmatprep.subr.mxu0 0.0
    %367 = vmatpush1.xpose.msra.mxu0 0.0
    %368 = vmatprep.subr.mxu0 0.0
    %369 = vmatpush1.xpose.msra.mxu0 0.0
    %370 = vmatprep.subr.mxu0 0.0
    %371 = vmatpush1.xpose.msra.mxu0 0.0
    %372 = vmatprep.subr.mxu0 0.0
    %373 = vmatpush1.xpose.msra.mxu0 0.0
    %374 = vmatprep.subr.mxu0 0.0
    %375 = vmatpush1.xpose.msra.mxu0 0.0
    %376 = vmatprep.subr.mxu0 0.0
    %377 = vmatpush1.xpose.msra.mxu0 0.0
    %378 = vmatprep.subr.mxu0 0.0
    %379 = vmatpush1.xpose.msra.mxu0 0.0
    %380 = vmatprep.subr.mxu0 0.0
    %381 = vmatpush1.xpose.msra.mxu0 0.0
    %382 = vmatprep.subr.mxu0 0.0
    %383 = vmatpush1.xpose.msra.mxu0 0.0
    %384 = vmatprep.subr.mxu0 0.0
    %385 = vmatpush1.xpose.msra.mxu0 0.0
    %386 = vmatprep.subr.mxu0 0.0
    %387 = vmatpush1.xpose.msra.mxu0 0.0
    %388 = vmatprep.subr.mxu0 0.0
    %389 = vmatpush1.xpose.msra.mxu0 0.0
    %390 = vmatprep.subr.mxu0 0.0
    %391 = vmatpush1.xpose.msra.mxu0 0.0
    %392 = vmatprep.subr.mxu0 0.0
    %393 = vmatpush1.xpose.msra.mxu0 0.0
    %394 = vmatprep.subr.mxu0 0.0
    %395 = vmatpush1.xpose.msra.mxu0 %v362
    %396 = vmatprep.subr.mxu0 0.0
    %397 = vmatpush2.xpose.msra.mxu0 0.0
    %398 = vmatprep.subr.mxu0 0.0
    %399 = vmatpush2.xpose.msra.mxu0 0.0
    %400 = vmatprep.subr.mxu0 0.0
    %401 = vmatpush2.xpose.msra.mxu0 0.0
    %402 = vmatprep.subr.mxu0 0.0
    %403 = vmatpush2.xpose.msra.mxu0 0.0
    %404 = vmatprep.subr.mxu0 0.0
    %405 = vmatpush2.xpose.msra.mxu0 0.0
    %406 = vmatprep.subr.mxu0 0.0
    %407 = vmatpush2.xpose.msra.mxu0 0.0
    %408 = vmatprep.subr.mxu0 0.0
    %409 = vmatpush2.xpose.msra.mxu0 0.0
    %410 = vmatprep.subr.mxu0 0.0
    %411 = vmatpush2.xpose.msra.mxu0 0.0
    %412 = vmatprep.subr.mxu0 0.0
    %413 = vmatpush2.xpose.msra.mxu0 0.0
    %414 = vmatprep.subr.mxu0 0.0
    %415 = vmatpush2.xpose.msra.mxu0 0.0
    %416 = vmatprep.subr.mxu0 0.0
    %417 = vmatpush2.xpose.msra.mxu0 0.0
    %418 = vmatprep.subr.mxu0 0.0
    %419 = vmatpush2.xpose.msra.mxu0 0.0
    %420 = vmatprep.subr.mxu0 0.0
    %421 = vmatpush2.xpose.msra.mxu0 0.0
    %422 = vmatprep.subr.mxu0 0.0
    %423 = vmatpush2.xpose.msra.mxu0 0.0
    %424 = vmatprep.subr.mxu0 0.0
    %425 = vmatpush2.xpose.msra.mxu0 0.0
    %426 = vmatprep.subr.mxu0 0.0
    %427 = vmatpush2.xpose.msra.mxu0 0.0
    %428 = vmatprep.mubr.f32.mxu0 0.0
    %429 = vmatmul.mubr.f32.gmra.mxu0 %v360
    %v430 = vpop.f32.mrf.mxu0
    %v431 = vadd.f32 0.0, %v430
    %v432 = vpop.f32.mrf.mxu0
    %433 = vdwg.mxu0
    %v434 = vsel %vm189, %v431, -1e+30
    %v435 = vsel %vm193, %v434, -inf
    %436 = vmax.xlane.f32.xlu0 %v435
    %v437 = vpop.xlane.xlu0 %436
    %v438 = vsub.f32 %v434, %v437
    %v439 = vmul.f32 %v438, 1.442695
    %v440 = vpow.pop %v439
    %v441 = vsel %vm193, %v440, 0.0
    %442 = vadd.xlane.f32.xlu0 %v441
    %v443 = vpop.xlane.xlu0 %442
    %444 = vrot.lane.b32.xlu0 %v177, 56
    %v445 = vpop.permute.xlu0 %444
    %v448 = vsel %vm193, %v440, 0
    %450 = vmatprep.subr.mxu0 0.0
    %451 = vmatpush1.msra.mxu0 0.0
    %452 = vmatprep.subr.mxu0 0.0
    %453 = vmatpush1.msra.mxu0 0.0
    %454 = vmatprep.subr.mxu0 0.0
    %455 = vmatpush1.msra.mxu0 0.0
    %456 = vmatprep.subr.mxu0 0.0
    %457 = vmatpush1.msra.mxu0 0.0
    %458 = vmatprep.subr.mxu0 0.0
    %459 = vmatpush1.msra.mxu0 0.0
    %460 = vmatprep.subr.mxu0 0.0
    %461 = vmatpush1.msra.mxu0 0.0
    %462 = vmatprep.subr.mxu0 0.0
    %463 = vmatpush1.msra.mxu0 0.0
    %464 = vmatprep.subr.mxu0 0.0
    %465 = vmatpush1.msra.mxu0 0.0
    %466 = vmatprep.subr.mxu0 0.0
    %467 = vmatpush1.msra.mxu0 0.0
    %468 = vmatprep.subr.mxu0 0.0
    %469 = vmatpush1.msra.mxu0 0.0
    %470 = vmatprep.subr.mxu0 0.0
    %471 = vmatpush1.msra.mxu0 0.0
    %472 = vmatprep.subr.mxu0 0.0
    %473 = vmatpush1.msra.mxu0 0.0
    %474 = vmatprep.subr.mxu0 0.0
    %475 = vmatpush1.msra.mxu0 0.0
    %476 = vmatprep.subr.mxu0 0.0
    %477 = vmatpush1.msra.mxu0 0.0
    %478 = vmatprep.subr.mxu0 0.0
    %479 = vmatpush1.msra.mxu0 0.0
    %480 = vmatprep.subr.mxu0 0.0
    %481 = vmatpush1.msra.mxu0 %v445
    %482 = vmatprep.subr.mxu0 0.0
    %483 = vmatpush2.msra.mxu0 0.0
    %484 = vmatprep.subr.mxu0 0.0
    %485 = vmatpush2.msra.mxu0 0.0
    %486 = vmatprep.subr.mxu0 0.0
    %487 = vmatpush2.msra.mxu0 0.0
    %488 = vmatprep.subr.mxu0 0.0
    %489 = vmatpush2.msra.mxu0 0.0
    %490 = vmatprep.subr.mxu0 0.0
    %491 = vmatpush2.msra.mxu0 0.0
    %492 = vmatprep.subr.mxu0 0.0
    %493 = vmatpush2.msra.mxu0 0.0
    %494 = vmatprep.subr.mxu0 0.0
    %495 = vmatpush2.msra.mxu0 0.0
    %496 = vmatprep.subr.mxu0 0.0
    %497 = vmatpush2.msra.mxu0 0.0
    %498 = vmatprep.subr.mxu0 0.0
    %499 = vmatpush2.msra.mxu0 0.0
    %500 = vmatprep.subr.mxu0 0.0
    %501 = vmatpush2.msra.mxu0 0.0
    %502 = vmatprep.subr.mxu0 0.0
    %503 = vmatpush2.msra.mxu0 0.0
    %504 = vmatprep.subr.mxu0 0.0
    %505 = vmatpush2.msra.mxu0 0.0
    %506 = vmatprep.subr.mxu0 0.0
    %507 = vmatpush2.msra.mxu0 0.0
    %508 = vmatprep.subr.mxu0 0.0
    %509 = vmatpush2.msra.mxu0 0.0
    %510 = vmatprep.subr.mxu0 0.0
    %511 = vmatpush2.msra.mxu0 0.0
    %512 = vmatprep.subr.mxu0 0.0
    %513 = vmatpush2.msra.mxu0 0.0
    %514 = vmatprep.mubr.f32.mxu0 0.0
    %515 = vmatmul.mubr.f32.gmra.mxu0 %v448
    %v516 = vpop.f32.mrf.mxu0
    %v517 = vadd.f32 0.0, %v516
    %v518 = vpop.f32.mrf.mxu0
    %519 = vdwg.mxu0
    %v520 = vrcp.pop %v443
    %v521 = vmul.f32 %v517, %v520
    %522 = vrot.lane.b32.xlu0 %v177, 112
    %v523 = vpop.permute.xlu0 %522
    %524 = vrot.lane.b32.xlu0 %v177, 80
    %v525 = vpop.permute.xlu0 %524
    %v526 = vsel %vm193, %v523, 0
    %v528 = vsel %vm193, %v525, 0
    %530 = vmatprep.subr.mxu0 0.0
    %531 = vmatpush1.xpose.msra.mxu0 0.0
    %532 = vmatprep.subr.mxu0 0.0
    %533 = vmatpush1.xpose.msra.mxu0 0.0
    %534 = vmatprep.subr.mxu0 0.0
    %535 = vmatpush1.xpose.msra.mxu0 0.0
    %536 = vmatprep.subr.mxu0 0.0
    %537 = vmatpush1.xpose.msra.mxu0 0.0
    %538 = vmatprep.subr.mxu0 0.0
    %539 = vmatpush1.xpose.msra.mxu0 0.0
    %540 = vmatprep.subr.mxu0 0.0
    %541 = vmatpush1.xpose.msra.mxu0 0.0
    %542 = vmatprep.subr.mxu0 0.0
    %543 = vmatpush1.xpose.msra.mxu0 0.0
    %544 = vmatprep.subr.mxu0 0.0
    %545 = vmatpush1.xpose.msra.mxu0 0.0
    %546 = vmatprep.subr.mxu0 0.0
    %547 = vmatpush1.xpose.msra.mxu0 0.0
    %548 = vmatprep.subr.mxu0 0.0
    %549 = vmatpush1.xpose.msra.mxu0 0.0
    %550 = vmatprep.subr.mxu0 0.0
    %551 = vmatpush1.xpose.msra.mxu0 0.0
    %552 = vmatprep.subr.mxu0 0.0
    %553 = vmatpush1.xpose.msra.mxu0 0.0
    %554 = vmatprep.subr.mxu0 0.0
    %555 = vmatpush1.xpose.msra.mxu0 0.0
    %556 = vmatprep.subr.mxu0 0.0
    %557 = vmatpush1.xpose.msra.mxu0 0.0
    %558 = vmatprep.subr.mxu0 0.0
    %559 = vmatpush1.xpose.msra.mxu0 0.0
    %560 = vmatprep.subr.mxu0 0.0
    %561 = vmatpush1.xpose.msra.mxu0 %v528
    %562 = vmatprep.subr.mxu0 0.0
    %563 = vmatpush2.xpose.msra.mxu0 0.0
    %564 = vmatprep.subr.mxu0 0.0
    %565 = vmatpush2.xpose.msra.mxu0 0.0
    %566 = vmatprep.subr.mxu0 0.0
    %567 = vmatpush2.xpose.msra.mxu0 0.0
    %568 = vmatprep.subr.mxu0 0.0
    %569 = vmatpush2.xpose.msra.mxu0 0.0
    %570 = vmatprep.subr.mxu0 0.0
    %571 = vmatpush2.xpose.msra.mxu0 0.0
    %572 = vmatprep.subr.mxu0 0.0
    %573 = vmatpush2.xpose.msra.mxu0 0.0
    %574 = vmatprep.subr.mxu0 0.0
    %575 = vmatpush2.xpose.msra.mxu0 0.0
    %576 = vmatprep.subr.mxu0 0.0
    %577 = vmatpush2.xpose.msra.mxu0 0.0
    %578 = vmatprep.subr.mxu0 0.0
    %579 = vmatpush2.xpose.msra.mxu0 0.0
    %580 = vmatprep.subr.mxu0 0.0
    %581 = vmatpush2.xpose.msra.mxu0 0.0
    %582 = vmatprep.subr.mxu0 0.0
    %583 = vmatpush2.xpose.msra.mxu0 0.0
    %584 = vmatprep.subr.mxu0 0.0
    %585 = vmatpush2.xpose.msra.mxu0 0.0
    %586 = vmatprep.subr.mxu0 0.0
    %587 = vmatpush2.xpose.msra.mxu0 0.0
    %588 = vmatprep.subr.mxu0 0.0
    %589 = vmatpush2.xpose.msra.mxu0 0.0
    %590 = vmatprep.subr.mxu0 0.0
    %591 = vmatpush2.xpose.msra.mxu0 0.0
    %592 = vmatprep.subr.mxu0 0.0
    %593 = vmatpush2.xpose.msra.mxu0 0.0
    %594 = vmatprep.mubr.f32.mxu0 0.0
    %595 = vmatmul.mubr.f32.gmra.mxu0 %v526
    %v596 = vpop.f32.mrf.mxu0
    %v597 = vadd.f32 0.0, %v596
    %v598 = vpop.f32.mrf.mxu0
    %599 = vdwg.mxu0
    %v600 = vsel %vm189, %v597, -1e+30
    %v601 = vsel %vm193, %v600, -inf
    %602 = vmax.xlane.f32.xlu0 %v601
    %v603 = vpop.xlane.xlu0 %602
    %v604 = vsub.f32 %v600, %v603
    %v605 = vmul.f32 %v604, 1.442695
    %v606 = vpow.pop %v605
    %v607 = vsel %vm193, %v606, 0.0
    %608 = vadd.xlane.f32.xlu0 %v607
    %v609 = vpop.xlane.xlu0 %608
    %610 = vrot.lane.b32.xlu0 %v177, 48
    %v611 = vpop.permute.xlu0 %610
    %v614 = vsel %vm193, %v606, 0
    %616 = vmatprep.subr.mxu0 0.0
    %617 = vmatpush1.msra.mxu0 0.0
    %618 = vmatprep.subr.mxu0 0.0
    %619 = vmatpush1.msra.mxu0 0.0
    %620 = vmatprep.subr.mxu0 0.0
    %621 = vmatpush1.msra.mxu0 0.0
    %622 = vmatprep.subr.mxu0 0.0
    %623 = vmatpush1.msra.mxu0 0.0
    %624 = vmatprep.subr.mxu0 0.0
    %625 = vmatpush1.msra.mxu0 0.0
    %626 = vmatprep.subr.mxu0 0.0
    %627 = vmatpush1.msra.mxu0 0.0
    %628 = vmatprep.subr.mxu0 0.0
    %629 = vmatpush1.msra.mxu0 0.0
    %630 = vmatprep.subr.mxu0 0.0
    %631 = vmatpush1.msra.mxu0 0.0
    %632 = vmatprep.subr.mxu0 0.0
    %633 = vmatpush1.msra.mxu0 0.0
    %634 = vmatprep.subr.mxu0 0.0
    %635 = vmatpush1.msra.mxu0 0.0
    %636 = vmatprep.subr.mxu0 0.0
    %637 = vmatpush1.msra.mxu0 0.0
    %638 = vmatprep.subr.mxu0 0.0
    %639 = vmatpush1.msra.mxu0 0.0
    %640 = vmatprep.subr.mxu0 0.0
    %641 = vmatpush1.msra.mxu0 0.0
    %642 = vmatprep.subr.mxu0 0.0
    %643 = vmatpush1.msra.mxu0 0.0
    %644 = vmatprep.subr.mxu0 0.0
    %645 = vmatpush1.msra.mxu0 0.0
    %646 = vmatprep.subr.mxu0 0.0
    %647 = vmatpush1.msra.mxu0 %v611
    %648 = vmatprep.subr.mxu0 0.0
    %649 = vmatpush2.msra.mxu0 0.0
    %650 = vmatprep.subr.mxu0 0.0
    %651 = vmatpush2.msra.mxu0 0.0
    %652 = vmatprep.subr.mxu0 0.0
    %653 = vmatpush2.msra.mxu0 0.0
    %654 = vmatprep.subr.mxu0 0.0
    %655 = vmatpush2.msra.mxu0 0.0
    %656 = vmatprep.subr.mxu0 0.0
    %657 = vmatpush2.msra.mxu0 0.0
    %658 = vmatprep.subr.mxu0 0.0
    %659 = vmatpush2.msra.mxu0 0.0
    %660 = vmatprep.subr.mxu0 0.0
    %661 = vmatpush2.msra.mxu0 0.0
    %662 = vmatprep.subr.mxu0 0.0
    %663 = vmatpush2.msra.mxu0 0.0
    %664 = vmatprep.subr.mxu0 0.0
    %665 = vmatpush2.msra.mxu0 0.0
    %666 = vmatprep.subr.mxu0 0.0
    %667 = vmatpush2.msra.mxu0 0.0
    %668 = vmatprep.subr.mxu0 0.0
    %669 = vmatpush2.msra.mxu0 0.0
    %670 = vmatprep.subr.mxu0 0.0
    %671 = vmatpush2.msra.mxu0 0.0
    %672 = vmatprep.subr.mxu0 0.0
    %673 = vmatpush2.msra.mxu0 0.0
    %674 = vmatprep.subr.mxu0 0.0
    %675 = vmatpush2.msra.mxu0 0.0
    %676 = vmatprep.subr.mxu0 0.0
    %677 = vmatpush2.msra.mxu0 0.0
    %678 = vmatprep.subr.mxu0 0.0
    %679 = vmatpush2.msra.mxu0 0.0
    %680 = vmatprep.mubr.f32.mxu0 0.0
    %681 = vmatmul.mubr.f32.gmra.mxu0 %v614
    %v682 = vpop.f32.mrf.mxu0
    %v683 = vadd.f32 0.0, %v682
    %v684 = vpop.f32.mrf.mxu0
    %685 = vdwg.mxu0
    %v686 = vrcp.pop %v609
    %v687 = vmul.f32 %v683, %v686
    %688 = vrot.lane.b32.xlu0 %v177, 104
    %v689 = vpop.permute.xlu0 %688
    %690 = vrot.lane.b32.xlu0 %v177, 72
    %v691 = vpop.permute.xlu0 %690
    %v692 = vsel %vm193, %v689, 0
    %v694 = vsel %vm193, %v691, 0
    %696 = vmatprep.subr.mxu0 0.0
    %697 = vmatpush1.xpose.msra.mxu0 0.0
    %698 = vmatprep.subr.mxu0 0.0
    %699 = vmatpush1.xpose.msra.mxu0 0.0
    %700 = vmatprep.subr.mxu0 0.0
    %701 = vmatpush1.xpose.msra.mxu0 0.0
    %702 = vmatprep.subr.mxu0 0.0
    %703 = vmatpush1.xpose.msra.mxu0 0.0
    %704 = vmatprep.subr.mxu0 0.0
    %705 = vmatpush1.xpose.msra.mxu0 0.0
    %706 = vmatprep.subr.mxu0 0.0
    %707 = vmatpush1.xpose.msra.mxu0 0.0
    %708 = vmatprep.subr.mxu0 0.0
    %709 = vmatpush1.xpose.msra.mxu0 0.0
    %710 = vmatprep.subr.mxu0 0.0
    %711 = vmatpush1.xpose.msra.mxu0 0.0
    %712 = vmatprep.subr.mxu0 0.0
    %713 = vmatpush1.xpose.msra.mxu0 0.0
    %714 = vmatprep.subr.mxu0 0.0
    %715 = vmatpush1.xpose.msra.mxu0 0.0
    %716 = vmatprep.subr.mxu0 0.0
    %717 = vmatpush1.xpose.msra.mxu0 0.0
    %718 = vmatprep.subr.mxu0 0.0
    %719 = vmatpush1.xpose.msra.mxu0 0.0
    %720 = vmatprep.subr.mxu0 0.0
    %721 = vmatpush1.xpose.msra.mxu0 0.0
    %722 = vmatprep.subr.mxu0 0.0
    %723 = vmatpush1.xpose.msra.mxu0 0.0
    %724 = vmatprep.subr.mxu0 0.0
    %725 = vmatpush1.xpose.msra.mxu0 0.0
    %726 = vmatprep.subr.mxu0 0.0
    %727 = vmatpush1.xpose.msra.mxu0 %v694
    %728 = vmatprep.subr.mxu0 0.0
    %729 = vmatpush2.xpose.msra.mxu0 0.0
    %730 = vmatprep.subr.mxu0 0.0
    %731 = vmatpush2.xpose.msra.mxu0 0.0
    %732 = vmatprep.subr.mxu0 0.0
    %733 = vmatpush2.xpose.msra.mxu0 0.0
    %734 = vmatprep.subr.mxu0 0.0
    %735 = vmatpush2.xpose.msra.mxu0 0.0
    %736 = vmatprep.subr.mxu0 0.0
    %737 = vmatpush2.xpose.msra.mxu0 0.0
    %738 = vmatprep.subr.mxu0 0.0
    %739 = vmatpush2.xpose.msra.mxu0 0.0
    %740 = vmatprep.subr.mxu0 0.0
    %741 = vmatpush2.xpose.msra.mxu0 0.0
    %742 = vmatprep.subr.mxu0 0.0
    %743 = vmatpush2.xpose.msra.mxu0 0.0
    %744 = vmatprep.subr.mxu0 0.0
    %745 = vmatpush2.xpose.msra.mxu0 0.0
    %746 = vmatprep.subr.mxu0 0.0
    %747 = vmatpush2.xpose.msra.mxu0 0.0
    %748 = vmatprep.subr.mxu0 0.0
    %749 = vmatpush2.xpose.msra.mxu0 0.0
    %750 = vmatprep.subr.mxu0 0.0
    %751 = vmatpush2.xpose.msra.mxu0 0.0
    %752 = vmatprep.subr.mxu0 0.0
    %753 = vmatpush2.xpose.msra.mxu0 0.0
    %754 = vmatprep.subr.mxu0 0.0
    %755 = vmatpush2.xpose.msra.mxu0 0.0
    %756 = vmatprep.subr.mxu0 0.0
    %757 = vmatpush2.xpose.msra.mxu0 0.0
    %758 = vmatprep.subr.mxu0 0.0
    %759 = vmatpush2.xpose.msra.mxu0 0.0
    %760 = vmatprep.mubr.f32.mxu0 0.0
    %761 = vmatmul.mubr.f32.gmra.mxu0 %v692
    %v762 = vpop.f32.mrf.mxu0
    %v763 = vadd.f32 0.0, %v762
    %v764 = vpop.f32.mrf.mxu0
    %765 = vdwg.mxu0
    %v766 = vsel %vm189, %v763, -1e+30
    %v767 = vsel %vm193, %v766, -inf
    %768 = vmax.xlane.f32.xlu0 %v767
    %v769 = vpop.xlane.xlu0 %768
    %v770 = vsub.f32 %v766, %v769
    %v771 = vmul.f32 %v770, 1.442695
    %v772 = vpow.pop %v771
    %v773 = vsel %vm193, %v772, 0.0
    %774 = vadd.xlane.f32.xlu0 %v773
    %v775 = vpop.xlane.xlu0 %774
    %776 = vrot.lane.b32.xlu0 %v177, 40
    %v777 = vpop.permute.xlu0 %776
    %v780 = vsel %vm193, %v772, 0
    %782 = vmatprep.subr.mxu0 0.0
    %783 = vmatpush1.msra.mxu0 0.0
    %784 = vmatprep.subr.mxu0 0.0
    %785 = vmatpush1.msra.mxu0 0.0
    %786 = vmatprep.subr.mxu0 0.0
    %787 = vmatpush1.msra.mxu0 0.0
    %788 = vmatprep.subr.mxu0 0.0
    %789 = vmatpush1.msra.mxu0 0.0
    %790 = vmatprep.subr.mxu0 0.0
    %791 = vmatpush1.msra.mxu0 0.0
    %792 = vmatprep.subr.mxu0 0.0
    %793 = vmatpush1.msra.mxu0 0.0
    %794 = vmatprep.subr.mxu0 0.0
    %795 = vmatpush1.msra.mxu0 0.0
    %796 = vmatprep.subr.mxu0 0.0
    %797 = vmatpush1.msra.mxu0 0.0
    %798 = vmatprep.subr.mxu0 0.0
    %799 = vmatpush1.msra.mxu0 0.0
    %800 = vmatprep.subr.mxu0 0.0
    %801 = vmatpush1.msra.mxu0 0.0
    %802 = vmatprep.subr.mxu0 0.0
    %803 = vmatpush1.msra.mxu0 0.0
    %804 = vmatprep.subr.mxu0 0.0
    %805 = vmatpush1.msra.mxu0 0.0
    %806 = vmatprep.subr.mxu0 0.0
    %807 = vmatpush1.msra.mxu0 0.0
    %808 = vmatprep.subr.mxu0 0.0
    %809 = vmatpush1.msra.mxu0 0.0
    %810 = vmatprep.subr.mxu0 0.0
    %811 = vmatpush1.msra.mxu0 0.0
    %812 = vmatprep.subr.mxu0 0.0
    %813 = vmatpush1.msra.mxu0 %v777
    %814 = vmatprep.subr.mxu0 0.0
    %815 = vmatpush2.msra.mxu0 0.0
    %816 = vmatprep.subr.mxu0 0.0
    %817 = vmatpush2.msra.mxu0 0.0
    %818 = vmatprep.subr.mxu0 0.0
    %819 = vmatpush2.msra.mxu0 0.0
    %820 = vmatprep.subr.mxu0 0.0
    %821 = vmatpush2.msra.mxu0 0.0
    %822 = vmatprep.subr.mxu0 0.0
    %823 = vmatpush2.msra.mxu0 0.0
    %824 = vmatprep.subr.mxu0 0.0
    %825 = vmatpush2.msra.mxu0 0.0
    %826 = vmatprep.subr.mxu0 0.0
    %827 = vmatpush2.msra.mxu0 0.0
    %828 = vmatprep.subr.mxu0 0.0
    %829 = vmatpush2.msra.mxu0 0.0
    %830 = vmatprep.subr.mxu0 0.0
    %831 = vmatpush2.msra.mxu0 0.0
    %832 = vmatprep.subr.mxu0 0.0
    %833 = vmatpush2.msra.mxu0 0.0
    %834 = vmatprep.subr.mxu0 0.0
    %835 = vmatpush2.msra.mxu0 0.0
    %836 = vmatprep.subr.mxu0 0.0
    %837 = vmatpush2.msra.mxu0 0.0
    %838 = vmatprep.subr.mxu0 0.0
    %839 = vmatpush2.msra.mxu0 0.0
    %840 = vmatprep.subr.mxu0 0.0
    %841 = vmatpush2.msra.mxu0 0.0
    %842 = vmatprep.subr.mxu0 0.0
    %843 = vmatpush2.msra.mxu0 0.0
    %844 = vmatprep.subr.mxu0 0.0
    %845 = vmatpush2.msra.mxu0 0.0
    %846 = vmatprep.mubr.f32.mxu0 0.0
    %847 = vmatmul.mubr.f32.gmra.mxu0 %v780
    %v848 = vpop.f32.mrf.mxu0
    %v849 = vadd.f32 0.0, %v848
    %v850 = vpop.f32.mrf.mxu0
    %851 = vdwg.mxu0
    %v852 = vrcp.pop %v775
    %v853 = vmul.f32 %v849, %v852
    %855 = vrot.lane.b32.xlu0 %v521, 8
    %v856 = vpop.permute.xlu0 %855
    %859 = vrot.lane.b32.xlu0 %v687, 16
    %v860 = vpop.permute.xlu0 %859
    %863 = vrot.lane.b32.xlu0 %v853, 24
    %v864 = vpop.permute.xlu0 %863
    %v866 = vsel %vm193, %v355, %v856
    %vm867 = vcmask 130048
    %v868 = vsel %vm867, %v866, %v860
    %vm869 = vcmask 195584
    %v870 = vsel %vm869, %v868, %v864
    %872 = vrot.lane.b32.xlu0 %v182, 96
    %v873 = vpop.permute.xlu0 %872
    %v874 = vsel %vm193, %v182, 0
    %v876 = vsel %vm193, %v873, 0
    %878 = vmatprep.subr.mxu0 0.0
    %879 = vmatpush1.xpose.msra.mxu0 0.0
    %880 = vmatprep.subr.mxu0 0.0
    %881 = vmatpush1.xpose.msra.mxu0 0.0
    %882 = vmatprep.subr.mxu0 0.0
    %883 = vmatpush1.xpose.msra.mxu0 0.0
    %884 = vmatprep.subr.mxu0 0.0
    %885 = vmatpush1.xpose.msra.mxu0 0.0
    %886 = vmatprep.subr.mxu0 0.0
    %887 = vmatpush1.xpose.msra.mxu0 0.0
    %888 = vmatprep.subr.mxu0 0.0
    %889 = vmatpush1.xpose.msra.mxu0 0.0
    %890 = vmatprep.subr.mxu0 0.0
    %891 = vmatpush1.xpose.msra.mxu0 0.0
    %892 = vmatprep.subr.mxu0 0.0
    %893 = vmatpush1.xpose.msra.mxu0 0.0
    %894 = vmatprep.subr.mxu0 0.0
    %895 = vmatpush1.xpose.msra.mxu0 0.0
    %896 = vmatprep.subr.mxu0 0.0
    %897 = vmatpush1.xpose.msra.mxu0 0.0
    %898 = vmatprep.subr.mxu0 0.0
    %899 = vmatpush1.xpose.msra.mxu0 0.0
    %900 = vmatprep.subr.mxu0 0.0
    %901 = vmatpush1.xpose.msra.mxu0 0.0
    %902 = vmatprep.subr.mxu0 0.0
    %903 = vmatpush1.xpose.msra.mxu0 0.0
    %904 = vmatprep.subr.mxu0 0.0
    %905 = vmatpush1.xpose.msra.mxu0 0.0
    %906 = vmatprep.subr.mxu0 0.0
    %907 = vmatpush1.xpose.msra.mxu0 0.0
    %908 = vmatprep.subr.mxu0 0.0
    %909 = vmatpush1.xpose.msra.mxu0 %v876
    %910 = vmatprep.subr.mxu0 0.0
    %911 = vmatpush2.xpose.msra.mxu0 0.0
    %912 = vmatprep.subr.mxu0 0.0
    %913 = vmatpush2.xpose.msra.mxu0 0.0
    %914 = vmatprep.subr.mxu0 0.0
    %915 = vmatpush2.xpose.msra.mxu0 0.0
    %916 = vmatprep.subr.mxu0 0.0
    %917 = vmatpush2.xpose.msra.mxu0 0.0
    %918 = vmatprep.subr.mxu0 0.0
    %919 = vmatpush2.xpose.msra.mxu0 0.0
    %920 = vmatprep.subr.mxu0 0.0
    %921 = vmatpush2.xpose.msra.mxu0 0.0
    %922 = vmatprep.subr.mxu0 0.0
    %923 = vmatpush2.xpose.msra.mxu0 0.0
    %924 = vmatprep.subr.mxu0 0.0
    %925 = vmatpush2.xpose.msra.mxu0 0.0
    %926 = vmatprep.subr.mxu0 0.0
    %927 = vmatpush2.xpose.msra.mxu0 0.0
    %928 = vmatprep.subr.mxu0 0.0
    %929 = vmatpush2.xpose.msra.mxu0 0.0
    %930 = vmatprep.subr.mxu0 0.0
    %931 = vmatpush2.xpose.msra.mxu0 0.0
    %932 = vmatprep.subr.mxu0 0.0
    %933 = vmatpush2.xpose.msra.mxu0 0.0
    %934 = vmatprep.subr.mxu0 0.0
    %935 = vmatpush2.xpose.msra.mxu0 0.0
    %936 = vmatprep.subr.mxu0 0.0
    %937 = vmatpush2.xpose.msra.mxu0 0.0
    %938 = vmatprep.subr.mxu0 0.0
    %939 = vmatpush2.xpose.msra.mxu0 0.0
    %940 = vmatprep.subr.mxu0 0.0
    %941 = vmatpush2.xpose.msra.mxu0 0.0
    %942 = vmatprep.mubr.f32.mxu0 0.0
    %943 = vmatmul.mubr.f32.gmra.mxu0 %v874
    %v944 = vpop.f32.mrf.mxu0
    %v945 = vadd.f32 0.0, %v944
    %v946 = vpop.f32.mrf.mxu0
    %947 = vdwg.mxu0
    %v948 = vsel %vm189, %v945, -1e+30
    %v949 = vsel %vm193, %v948, -inf
    %950 = vmax.xlane.f32.xlu0 %v949
    %v951 = vpop.xlane.xlu0 %950
    %v952 = vsub.f32 %v948, %v951
    %v953 = vmul.f32 %v952, 1.442695
    %v954 = vpow.pop %v953
    %v955 = vsel %vm193, %v954, 0.0
    %956 = vadd.xlane.f32.xlu0 %v955
    %v957 = vpop.xlane.xlu0 %956
    %958 = vrot.lane.b32.xlu0 %v182, 64
    %v959 = vpop.permute.xlu0 %958
    %v962 = vsel %vm193, %v954, 0
    %964 = vmatprep.subr.mxu0 0.0
    %965 = vmatpush1.msra.mxu0 0.0
    %966 = vmatprep.subr.mxu0 0.0
    %967 = vmatpush1.msra.mxu0 0.0
    %968 = vmatprep.subr.mxu0 0.0
    %969 = vmatpush1.msra.mxu0 0.0
    %970 = vmatprep.subr.mxu0 0.0
    %971 = vmatpush1.msra.mxu0 0.0
    %972 = vmatprep.subr.mxu0 0.0
    %973 = vmatpush1.msra.mxu0 0.0
    %974 = vmatprep.subr.mxu0 0.0
    %975 = vmatpush1.msra.mxu0 0.0
    %976 = vmatprep.subr.mxu0 0.0
    %977 = vmatpush1.msra.mxu0 0.0
    %978 = vmatprep.subr.mxu0 0.0
    %979 = vmatpush1.msra.mxu0 0.0
    %980 = vmatprep.subr.mxu0 0.0
    %981 = vmatpush1.msra.mxu0 0.0
    %982 = vmatprep.subr.mxu0 0.0
    %983 = vmatpush1.msra.mxu0 0.0
    %984 = vmatprep.subr.mxu0 0.0
    %985 = vmatpush1.msra.mxu0 0.0
    %986 = vmatprep.subr.mxu0 0.0
    %987 = vmatpush1.msra.mxu0 0.0
    %988 = vmatprep.subr.mxu0 0.0
    %989 = vmatpush1.msra.mxu0 0.0
    %990 = vmatprep.subr.mxu0 0.0
    %991 = vmatpush1.msra.mxu0 0.0
    %992 = vmatprep.subr.mxu0 0.0
    %993 = vmatpush1.msra.mxu0 0.0
    %994 = vmatprep.subr.mxu0 0.0
    %995 = vmatpush1.msra.mxu0 %v959
    %996 = vmatprep.subr.mxu0 0.0
    %997 = vmatpush2.msra.mxu0 0.0
    %998 = vmatprep.subr.mxu0 0.0
    %999 = vmatpush2.msra.mxu0 0.0
    %1000 = vmatprep.subr.mxu0 0.0
    %1001 = vmatpush2.msra.mxu0 0.0
    %1002 = vmatprep.subr.mxu0 0.0
    %1003 = vmatpush2.msra.mxu0 0.0
    %1004 = vmatprep.subr.mxu0 0.0
    %1005 = vmatpush2.msra.mxu0 0.0
    %1006 = vmatprep.subr.mxu0 0.0
    %1007 = vmatpush2.msra.mxu0 0.0
    %1008 = vmatprep.subr.mxu0 0.0
    %1009 = vmatpush2.msra.mxu0 0.0
    %1010 = vmatprep.subr.mxu0 0.0
    %1011 = vmatpush2.msra.mxu0 0.0
    %1012 = vmatprep.subr.mxu0 0.0
    %1013 = vmatpush2.msra.mxu0 0.0
    %1014 = vmatprep.subr.mxu0 0.0
    %1015 = vmatpush2.msra.mxu0 0.0
    %1016 = vmatprep.subr.mxu0 0.0
    %1017 = vmatpush2.msra.mxu0 0.0
    %1018 = vmatprep.subr.mxu0 0.0
    %1019 = vmatpush2.msra.mxu0 0.0
    %1020 = vmatprep.subr.mxu0 0.0
    %1021 = vmatpush2.msra.mxu0 0.0
    %1022 = vmatprep.subr.mxu0 0.0
    %1023 = vmatpush2.msra.mxu0 0.0
    %1024 = vmatprep.subr.mxu0 0.0
    %1025 = vmatpush2.msra.mxu0 0.0
    %1026 = vmatprep.subr.mxu0 0.0
    %1027 = vmatpush2.msra.mxu0 0.0
    %1028 = vmatprep.mubr.f32.mxu0 0.0
    %1029 = vmatmul.mubr.f32.gmra.mxu0 %v962
    %v1030 = vpop.f32.mrf.mxu0
    %v1031 = vadd.f32 0.0, %v1030
    %v1032 = vpop.f32.mrf.mxu0
    %1033 = vdwg.mxu0
    %v1034 = vrcp.pop %v957
    %v1035 = vmul.f32 %v1031, %v1034
    %1036 = vrot.lane.b32.xlu0 %v182, 120
    %v1037 = vpop.permute.xlu0 %1036
    %1038 = vrot.lane.b32.xlu0 %v182, 88
    %v1039 = vpop.permute.xlu0 %1038
    %v1040 = vsel %vm193, %v1037, 0
    %v1042 = vsel %vm193, %v1039, 0
    %1044 = vmatprep.subr.mxu0 0.0
    %1045 = vmatpush1.xpose.msra.mxu0 0.0
    %1046 = vmatprep.subr.mxu0 0.0
    %1047 = vmatpush1.xpose.msra.mxu0 0.0
    %1048 = vmatprep.subr.mxu0 0.0
    %1049 = vmatpush1.xpose.msra.mxu0 0.0
    %1050 = vmatprep.subr.mxu0 0.0
    %1051 = vmatpush1.xpose.msra.mxu0 0.0
    %1052 = vmatprep.subr.mxu0 0.0
    %1053 = vmatpush1.xpose.msra.mxu0 0.0
    %1054 = vmatprep.subr.mxu0 0.0
    %1055 = vmatpush1.xpose.msra.mxu0 0.0
    %1056 = vmatprep.subr.mxu0 0.0
    %1057 = vmatpush1.xpose.msra.mxu0 0.0
    %1058 = vmatprep.subr.mxu0 0.0
    %1059 = vmatpush1.xpose.msra.mxu0 0.0
    %1060 = vmatprep.subr.mxu0 0.0
    %1061 = vmatpush1.xpose.msra.mxu0 0.0
    %1062 = vmatprep.subr.mxu0 0.0
    %1063 = vmatpush1.xpose.msra.mxu0 0.0
    %1064 = vmatprep.subr.mxu0 0.0
    %1065 = vmatpush1.xpose.msra.mxu0 0.0
    %1066 = vmatprep.subr.mxu0 0.0
    %1067 = vmatpush1.xpose.msra.mxu0 0.0
    %1068 = vmatprep.subr.mxu0 0.0
    %1069 = vmatpush1.xpose.msra.mxu0 0.0
    %1070 = vmatprep.subr.mxu0 0.0
    %1071 = vmatpush1.xpose.msra.mxu0 0.0
    %1072 = vmatprep.subr.mxu0 0.0
    %1073 = vmatpush1.xpose.msra.mxu0 0.0
    %1074 = vmatprep.subr.mxu0 0.0
    %1075 = vmatpush1.xpose.msra.mxu0 %v1042
    %1076 = vmatprep.subr.mxu0 0.0
    %1077 = vmatpush2.xpose.msra.mxu0 0.0
    %1078 = vmatprep.subr.mxu0 0.0
    %1079 = vmatpush2.xpose.msra.mxu0 0.0
    %1080 = vmatprep.subr.mxu0 0.0
    %1081 = vmatpush2.xpose.msra.mxu0 0.0
    %1082 = vmatprep.subr.mxu0 0.0
    %1083 = vmatpush2.xpose.msra.mxu0 0.0
    %1084 = vmatprep.subr.mxu0 0.0
    %1085 = vmatpush2.xpose.msra.mxu0 0.0
    %1086 = vmatprep.subr.mxu0 0.0
    %1087 = vmatpush2.xpose.msra.mxu0 0.0
    %1088 = vmatprep.subr.mxu0 0.0
    %1089 = vmatpush2.xpose.msra.mxu0 0.0
    %1090 = vmatprep.subr.mxu0 0.0
    %1091 = vmatpush2.xpose.msra.mxu0 0.0
    %1092 = vmatprep.subr.mxu0 0.0
    %1093 = vmatpush2.xpose.msra.mxu0 0.0
    %1094 = vmatprep.subr.mxu0 0.0
    %1095 = vmatpush2.xpose.msra.mxu0 0.0
    %1096 = vmatprep.subr.mxu0 0.0
    %1097 = vmatpush2.xpose.msra.mxu0 0.0
    %1098 = vmatprep.subr.mxu0 0.0
    %1099 = vmatpush2.xpose.msra.mxu0 0.0
    %1100 = vmatprep.subr.mxu0 0.0
    %1101 = vmatpush2.xpose.msra.mxu0 0.0
    %1102 = vmatprep.subr.mxu0 0.0
    %1103 = vmatpush2.xpose.msra.mxu0 0.0
    %1104 = vmatprep.subr.mxu0 0.0
    %1105 = vmatpush2.xpose.msra.mxu0 0.0
    %1106 = vmatprep.subr.mxu0 0.0
    %1107 = vmatpush2.xpose.msra.mxu0 0.0
    %1108 = vmatprep.mubr.f32.mxu0 0.0
    %1109 = vmatmul.mubr.f32.gmra.mxu0 %v1040
    %v1110 = vpop.f32.mrf.mxu0
    %v1111 = vadd.f32 0.0, %v1110
    %v1112 = vpop.f32.mrf.mxu0
    %1113 = vdwg.mxu0
    %v1114 = vsel %vm189, %v1111, -1e+30
    %v1115 = vsel %vm193, %v1114, -inf
    %1116 = vmax.xlane.f32.xlu0 %v1115
    %v1117 = vpop.xlane.xlu0 %1116
    %v1118 = vsub.f32 %v1114, %v1117
    %v1119 = vmul.f32 %v1118, 1.442695
    %v1120 = vpow.pop %v1119
    %v1121 = vsel %vm193, %v1120, 0.0
    %1122 = vadd.xlane.f32.xlu0 %v1121
    %v1123 = vpop.xlane.xlu0 %1122
    %1124 = vrot.lane.b32.xlu0 %v182, 56
    %v1125 = vpop.permute.xlu0 %1124
    %v1128 = vsel %vm193, %v1120, 0
    %1130 = vmatprep.subr.mxu0 0.0
    %1131 = vmatpush1.msra.mxu0 0.0
    %1132 = vmatprep.subr.mxu0 0.0
    %1133 = vmatpush1.msra.mxu0 0.0
    %1134 = vmatprep.subr.mxu0 0.0
    %1135 = vmatpush1.msra.mxu0 0.0
    %1136 = vmatprep.subr.mxu0 0.0
    %1137 = vmatpush1.msra.mxu0 0.0
    %1138 = vmatprep.subr.mxu0 0.0
    %1139 = vmatpush1.msra.mxu0 0.0
    %1140 = vmatprep.subr.mxu0 0.0
    %1141 = vmatpush1.msra.mxu0 0.0
    %1142 = vmatprep.subr.mxu0 0.0
    %1143 = vmatpush1.msra.mxu0 0.0
    %1144 = vmatprep.subr.mxu0 0.0
    %1145 = vmatpush1.msra.mxu0 0.0
    %1146 = vmatprep.subr.mxu0 0.0
    %1147 = vmatpush1.msra.mxu0 0.0
    %1148 = vmatprep.subr.mxu0 0.0
    %1149 = vmatpush1.msra.mxu0 0.0
    %1150 = vmatprep.subr.mxu0 0.0
    %1151 = vmatpush1.msra.mxu0 0.0
    %1152 = vmatprep.subr.mxu0 0.0
    %1153 = vmatpush1.msra.mxu0 0.0
    %1154 = vmatprep.subr.mxu0 0.0
    %1155 = vmatpush1.msra.mxu0 0.0
    %1156 = vmatprep.subr.mxu0 0.0
    %1157 = vmatpush1.msra.mxu0 0.0
    %1158 = vmatprep.subr.mxu0 0.0
    %1159 = vmatpush1.msra.mxu0 0.0
    %1160 = vmatprep.subr.mxu0 0.0
    %1161 = vmatpush1.msra.mxu0 %v1125
    %1162 = vmatprep.subr.mxu0 0.0
    %1163 = vmatpush2.msra.mxu0 0.0
    %1164 = vmatprep.subr.mxu0 0.0
    %1165 = vmatpush2.msra.mxu0 0.0
    %1166 = vmatprep.subr.mxu0 0.0
    %1167 = vmatpush2.msra.mxu0 0.0
    %1168 = vmatprep.subr.mxu0 0.0
    %1169 = vmatpush2.msra.mxu0 0.0
    %1170 = vmatprep.subr.mxu0 0.0
    %1171 = vmatpush2.msra.mxu0 0.0
    %1172 = vmatprep.subr.mxu0 0.0
    %1173 = vmatpush2.msra.mxu0 0.0
    %1174 = vmatprep.subr.mxu0 0.0
    %1175 = vmatpush2.msra.mxu0 0.0
    %1176 = vmatprep.subr.mxu0 0.0
    %1177 = vmatpush2.msra.mxu0 0.0
    %1178 = vmatprep.subr.mxu0 0.0
    %1179 = vmatpush2.msra.mxu0 0.0
    %1180 = vmatprep.subr.mxu0 0.0
    %1181 = vmatpush2.msra.mxu0 0.0
    %1182 = vmatprep.subr.mxu0 0.0
    %1183 = vmatpush2.msra.mxu0 0.0
    %1184 = vmatprep.subr.mxu0 0.0
    %1185 = vmatpush2.msra.mxu0 0.0
    %1186 = vmatprep.subr.mxu0 0.0
    %1187 = vmatpush2.msra.mxu0 0.0
    %1188 = vmatprep.subr.mxu0 0.0
    %1189 = vmatpush2.msra.mxu0 0.0
    %1190 = vmatprep.subr.mxu0 0.0
    %1191 = vmatpush2.msra.mxu0 0.0
    %1192 = vmatprep.subr.mxu0 0.0
    %1193 = vmatpush2.msra.mxu0 0.0
    %1194 = vmatprep.mubr.f32.mxu0 0.0
    %1195 = vmatmul.mubr.f32.gmra.mxu0 %v1128
    %v1196 = vpop.f32.mrf.mxu0
    %v1197 = vadd.f32 0.0, %v1196
    %v1198 = vpop.f32.mrf.mxu0
    %1199 = vdwg.mxu0
    %v1200 = vrcp.pop %v1123
    %v1201 = vmul.f32 %v1197, %v1200
    %1202 = vrot.lane.b32.xlu0 %v182, 112
    %v1203 = vpop.permute.xlu0 %1202
    %1204 = vrot.lane.b32.xlu0 %v182, 80
    %v1205 = vpop.permute.xlu0 %1204
    %v1206 = vsel %vm193, %v1203, 0
    %v1208 = vsel %vm193, %v1205, 0
    %1210 = vmatprep.subr.mxu0 0.0
    %1211 = vmatpush1.xpose.msra.mxu0 0.0
    %1212 = vmatprep.subr.mxu0 0.0
    %1213 = vmatpush1.xpose.msra.mxu0 0.0
    %1214 = vmatprep.subr.mxu0 0.0
    %1215 = vmatpush1.xpose.msra.mxu0 0.0
    %1216 = vmatprep.subr.mxu0 0.0
    %1217 = vmatpush1.xpose.msra.mxu0 0.0
    %1218 = vmatprep.subr.mxu0 0.0
    %1219 = vmatpush1.xpose.msra.mxu0 0.0
    %1220 = vmatprep.subr.mxu0 0.0
    %1221 = vmatpush1.xpose.msra.mxu0 0.0
    %1222 = vmatprep.subr.mxu0 0.0
    %1223 = vmatpush1.xpose.msra.mxu0 0.0
    %1224 = vmatprep.subr.mxu0 0.0
    %1225 = vmatpush1.xpose.msra.mxu0 0.0
    %1226 = vmatprep.subr.mxu0 0.0
    %1227 = vmatpush1.xpose.msra.mxu0 0.0
    %1228 = vmatprep.subr.mxu0 0.0
    %1229 = vmatpush1.xpose.msra.mxu0 0.0
    %1230 = vmatprep.subr.mxu0 0.0
    %1231 = vmatpush1.xpose.msra.mxu0 0.0
    %1232 = vmatprep.subr.mxu0 0.0
    %1233 = vmatpush1.xpose.msra.mxu0 0.0
    %1234 = vmatprep.subr.mxu0 0.0
    %1235 = vmatpush1.xpose.msra.mxu0 0.0
    %1236 = vmatprep.subr.mxu0 0.0
    %1237 = vmatpush1.xpose.msra.mxu0 0.0
    %1238 = vmatprep.subr.mxu0 0.0
    %1239 = vmatpush1.xpose.msra.mxu0 0.0
    %1240 = vmatprep.subr.mxu0 0.0
    %1241 = vmatpush1.xpose.msra.mxu0 %v1208
    %1242 = vmatprep.subr.mxu0 0.0
    %1243 = vmatpush2.xpose.msra.mxu0 0.0
    %1244 = vmatprep.subr.mxu0 0.0
    %1245 = vmatpush2.xpose.msra.mxu0 0.0
    %1246 = vmatprep.subr.mxu0 0.0
    %1247 = vmatpush2.xpose.msra.mxu0 0.0
    %1248 = vmatprep.subr.mxu0 0.0
    %1249 = vmatpush2.xpose.msra.mxu0 0.0
    %1250 = vmatprep.subr.mxu0 0.0
    %1251 = vmatpush2.xpose.msra.mxu0 0.0
    %1252 = vmatprep.subr.mxu0 0.0
    %1253 = vmatpush2.xpose.msra.mxu0 0.0
    %1254 = vmatprep.subr.mxu0 0.0
    %1255 = vmatpush2.xpose.msra.mxu0 0.0
    %1256 = vmatprep.subr.mxu0 0.0
    %1257 = vmatpush2.xpose.msra.mxu0 0.0
    %1258 = vmatprep.subr.mxu0 0.0
    %1259 = vmatpush2.xpose.msra.mxu0 0.0
    %1260 = vmatprep.subr.mxu0 0.0
    %1261 = vmatpush2.xpose.msra.mxu0 0.0
    %1262 = vmatprep.subr.mxu0 0.0
    %1263 = vmatpush2.xpose.msra.mxu0 0.0
    %1264 = vmatprep.subr.mxu0 0.0
    %1265 = vmatpush2.xpose.msra.mxu0 0.0
    %1266 = vmatprep.subr.mxu0 0.0
    %1267 = vmatpush2.xpose.msra.mxu0 0.0
    %1268 = vmatprep.subr.mxu0 0.0
    %1269 = vmatpush2.xpose.msra.mxu0 0.0
    %1270 = vmatprep.subr.mxu0 0.0
    %1271 = vmatpush2.xpose.msra.mxu0 0.0
    %1272 = vmatprep.subr.mxu0 0.0
    %1273 = vmatpush2.xpose.msra.mxu0 0.0
    %1274 = vmatprep.mubr.f32.mxu0 0.0
    %1275 = vmatmul.mubr.f32.gmra.mxu0 %v1206
    %v1276 = vpop.f32.mrf.mxu0
    %v1277 = vadd.f32 0.0, %v1276
    %v1278 = vpop.f32.mrf.mxu0
    %1279 = vdwg.mxu0
    %v1280 = vsel %vm189, %v1277, -1e+30
    %v1281 = vsel %vm193, %v1280, -inf
    %1282 = vmax.xlane.f32.xlu0 %v1281
    %v1283 = vpop.xlane.xlu0 %1282
    %v1284 = vsub.f32 %v1280, %v1283
    %v1285 = vmul.f32 %v1284, 1.442695
    %v1286 = vpow.pop %v1285
    %v1287 = vsel %vm193, %v1286, 0.0
    %1288 = vadd.xlane.f32.xlu0 %v1287
    %v1289 = vpop.xlane.xlu0 %1288
    %1290 = vrot.lane.b32.xlu0 %v182, 48
    %v1291 = vpop.permute.xlu0 %1290
    %v1294 = vsel %vm193, %v1286, 0
    %1296 = vmatprep.subr.mxu0 0.0
    %1297 = vmatpush1.msra.mxu0 0.0
    %1298 = vmatprep.subr.mxu0 0.0
    %1299 = vmatpush1.msra.mxu0 0.0
    %1300 = vmatprep.subr.mxu0 0.0
    %1301 = vmatpush1.msra.mxu0 0.0
    %1302 = vmatprep.subr.mxu0 0.0
    %1303 = vmatpush1.msra.mxu0 0.0
    %1304 = vmatprep.subr.mxu0 0.0
    %1305 = vmatpush1.msra.mxu0 0.0
    %1306 = vmatprep.subr.mxu0 0.0
    %1307 = vmatpush1.msra.mxu0 0.0
    %1308 = vmatprep.subr.mxu0 0.0
    %1309 = vmatpush1.msra.mxu0 0.0
    %1310 = vmatprep.subr.mxu0 0.0
    %1311 = vmatpush1.msra.mxu0 0.0
    %1312 = vmatprep.subr.mxu0 0.0
    %1313 = vmatpush1.msra.mxu0 0.0
    %1314 = vmatprep.subr.mxu0 0.0
    %1315 = vmatpush1.msra.mxu0 0.0
    %1316 = vmatprep.subr.mxu0 0.0
    %1317 = vmatpush1.msra.mxu0 0.0
    %1318 = vmatprep.subr.mxu0 0.0
    %1319 = vmatpush1.msra.mxu0 0.0
    %1320 = vmatprep.subr.mxu0 0.0
    %1321 = vmatpush1.msra.mxu0 0.0
    %1322 = vmatprep.subr.mxu0 0.0
    %1323 = vmatpush1.msra.mxu0 0.0
    %1324 = vmatprep.subr.mxu0 0.0
    %1325 = vmatpush1.msra.mxu0 0.0
    %1326 = vmatprep.subr.mxu0 0.0
    %1327 = vmatpush1.msra.mxu0 %v1291
    %1328 = vmatprep.subr.mxu0 0.0
    %1329 = vmatpush2.msra.mxu0 0.0
    %1330 = vmatprep.subr.mxu0 0.0
    %1331 = vmatpush2.msra.mxu0 0.0
    %1332 = vmatprep.subr.mxu0 0.0
    %1333 = vmatpush2.msra.mxu0 0.0
    %1334 = vmatprep.subr.mxu0 0.0
    %1335 = vmatpush2.msra.mxu0 0.0
    %1336 = vmatprep.subr.mxu0 0.0
    %1337 = vmatpush2.msra.mxu0 0.0
    %1338 = vmatprep.subr.mxu0 0.0
    %1339 = vmatpush2.msra.mxu0 0.0
    %1340 = vmatprep.subr.mxu0 0.0
    %1341 = vmatpush2.msra.mxu0 0.0
    %1342 = vmatprep.subr.mxu0 0.0
    %1343 = vmatpush2.msra.mxu0 0.0
    %1344 = vmatprep.subr.mxu0 0.0
    %1345 = vmatpush2.msra.mxu0 0.0
    %1346 = vmatprep.subr.mxu0 0.0
    %1347 = vmatpush2.msra.mxu0 0.0
    %1348 = vmatprep.subr.mxu0 0.0
    %1349 = vmatpush2.msra.mxu0 0.0
    %1350 = vmatprep.subr.mxu0 0.0
    %1351 = vmatpush2.msra.mxu0 0.0
    %1352 = vmatprep.subr.mxu0 0.0
    %1353 = vmatpush2.msra.mxu0 0.0
    %1354 = vmatprep.subr.mxu0 0.0
    %1355 = vmatpush2.msra.mxu0 0.0
    %1356 = vmatprep.subr.mxu0 0.0
    %1357 = vmatpush2.msra.mxu0 0.0
    %1358 = vmatprep.subr.mxu0 0.0
    %1359 = vmatpush2.msra.mxu0 0.0
    %1360 = vmatprep.mubr.f32.mxu0 0.0
    %1361 = vmatmul.mubr.f32.gmra.mxu0 %v1294
    %v1362 = vpop.f32.mrf.mxu0
    %v1363 = vadd.f32 0.0, %v1362
    %v1364 = vpop.f32.mrf.mxu0
    %1365 = vdwg.mxu0
    %v1366 = vrcp.pop %v1289
    %v1367 = vmul.f32 %v1363, %v1366
    %1368 = vrot.lane.b32.xlu0 %v182, 104
    %v1369 = vpop.permute.xlu0 %1368
    %1370 = vrot.lane.b32.xlu0 %v182, 72
    %v1371 = vpop.permute.xlu0 %1370
    %v1372 = vsel %vm193, %v1369, 0
    %v1374 = vsel %vm193, %v1371, 0
    %1376 = vmatprep.subr.mxu0 0.0
    %1377 = vmatpush1.xpose.msra.mxu0 0.0
    %1378 = vmatprep.subr.mxu0 0.0
    %1379 = vmatpush1.xpose.msra.mxu0 0.0
    %1380 = vmatprep.subr.mxu0 0.0
    %1381 = vmatpush1.xpose.msra.mxu0 0.0
    %1382 = vmatprep.subr.mxu0 0.0
    %1383 = vmatpush1.xpose.msra.mxu0 0.0
    %1384 = vmatprep.subr.mxu0 0.0
    %1385 = vmatpush1.xpose.msra.mxu0 0.0
    %1386 = vmatprep.subr.mxu0 0.0
    %1387 = vmatpush1.xpose.msra.mxu0 0.0
    %1388 = vmatprep.subr.mxu0 0.0
    %1389 = vmatpush1.xpose.msra.mxu0 0.0
    %1390 = vmatprep.subr.mxu0 0.0
    %1391 = vmatpush1.xpose.msra.mxu0 0.0
    %1392 = vmatprep.subr.mxu0 0.0
    %1393 = vmatpush1.xpose.msra.mxu0 0.0
    %1394 = vmatprep.subr.mxu0 0.0
    %1395 = vmatpush1.xpose.msra.mxu0 0.0
    %1396 = vmatprep.subr.mxu0 0.0
    %1397 = vmatpush1.xpose.msra.mxu0 0.0
    %1398 = vmatprep.subr.mxu0 0.0
    %1399 = vmatpush1.xpose.msra.mxu0 0.0
    %1400 = vmatprep.subr.mxu0 0.0
    %1401 = vmatpush1.xpose.msra.mxu0 0.0
    %1402 = vmatprep.subr.mxu0 0.0
    %1403 = vmatpush1.xpose.msra.mxu0 0.0
    %1404 = vmatprep.subr.mxu0 0.0
    %1405 = vmatpush1.xpose.msra.mxu0 0.0
    %1406 = vmatprep.subr.mxu0 0.0
    %1407 = vmatpush1.xpose.msra.mxu0 %v1374
    %1408 = vmatprep.subr.mxu0 0.0
    %1409 = vmatpush2.xpose.msra.mxu0 0.0
    %1410 = vmatprep.subr.mxu0 0.0
    %1411 = vmatpush2.xpose.msra.mxu0 0.0
    %1412 = vmatprep.subr.mxu0 0.0
    %1413 = vmatpush2.xpose.msra.mxu0 0.0
    %1414 = vmatprep.subr.mxu0 0.0
    %1415 = vmatpush2.xpose.msra.mxu0 0.0
    %1416 = vmatprep.subr.mxu0 0.0
    %1417 = vmatpush2.xpose.msra.mxu0 0.0
    %1418 = vmatprep.subr.mxu0 0.0
    %1419 = vmatpush2.xpose.msra.mxu0 0.0
    %1420 = vmatprep.subr.mxu0 0.0
    %1421 = vmatpush2.xpose.msra.mxu0 0.0
    %1422 = vmatprep.subr.mxu0 0.0
    %1423 = vmatpush2.xpose.msra.mxu0 0.0
    %1424 = vmatprep.subr.mxu0 0.0
    %1425 = vmatpush2.xpose.msra.mxu0 0.0
    %1426 = vmatprep.subr.mxu0 0.0
    %1427 = vmatpush2.xpose.msra.mxu0 0.0
    %1428 = vmatprep.subr.mxu0 0.0
    %1429 = vmatpush2.xpose.msra.mxu0 0.0
    %1430 = vmatprep.subr.mxu0 0.0
    %1431 = vmatpush2.xpose.msra.mxu0 0.0
    %1432 = vmatprep.subr.mxu0 0.0
    %1433 = vmatpush2.xpose.msra.mxu0 0.0
    %1434 = vmatprep.subr.mxu0 0.0
    %1435 = vmatpush2.xpose.msra.mxu0 0.0
    %1436 = vmatprep.subr.mxu0 0.0
    %1437 = vmatpush2.xpose.msra.mxu0 0.0
    %1438 = vmatprep.subr.mxu0 0.0
    %1439 = vmatpush2.xpose.msra.mxu0 0.0
    %1440 = vmatprep.mubr.f32.mxu0 0.0
    %1441 = vmatmul.mubr.f32.gmra.mxu0 %v1372
    %v1442 = vpop.f32.mrf.mxu0
    %v1443 = vadd.f32 0.0, %v1442
    %v1444 = vpop.f32.mrf.mxu0
    %1445 = vdwg.mxu0
    %v1446 = vsel %vm189, %v1443, -1e+30
    %v1447 = vsel %vm193, %v1446, -inf
    %1448 = vmax.xlane.f32.xlu0 %v1447
    %v1449 = vpop.xlane.xlu0 %1448
    %v1450 = vsub.f32 %v1446, %v1449
    %v1451 = vmul.f32 %v1450, 1.442695
    %v1452 = vpow.pop %v1451
    %v1453 = vsel %vm193, %v1452, 0.0
    %1454 = vadd.xlane.f32.xlu0 %v1453
    %v1455 = vpop.xlane.xlu0 %1454
    %1456 = vrot.lane.b32.xlu0 %v182, 40
    %v1457 = vpop.permute.xlu0 %1456
    %v1460 = vsel %vm193, %v1452, 0
    %1462 = vmatprep.subr.mxu0 0.0
    %1463 = vmatpush1.msra.mxu0 0.0
    %1464 = vmatprep.subr.mxu0 0.0
    %1465 = vmatpush1.msra.mxu0 0.0
    %1466 = vmatprep.subr.mxu0 0.0
    %1467 = vmatpush1.msra.mxu0 0.0
    %1468 = vmatprep.subr.mxu0 0.0
    %1469 = vmatpush1.msra.mxu0 0.0
    %1470 = vmatprep.subr.mxu0 0.0
    %1471 = vmatpush1.msra.mxu0 0.0
    %1472 = vmatprep.subr.mxu0 0.0
    %1473 = vmatpush1.msra.mxu0 0.0
    %1474 = vmatprep.subr.mxu0 0.0
    %1475 = vmatpush1.msra.mxu0 0.0
    %1476 = vmatprep.subr.mxu0 0.0
    %1477 = vmatpush1.msra.mxu0 0.0
    %1478 = vmatprep.subr.mxu0 0.0
    %1479 = vmatpush1.msra.mxu0 0.0
    %1480 = vmatprep.subr.mxu0 0.0
    %1481 = vmatpush1.msra.mxu0 0.0
    %1482 = vmatprep.subr.mxu0 0.0
    %1483 = vmatpush1.msra.mxu0 0.0
    %1484 = vmatprep.subr.mxu0 0.0
    %1485 = vmatpush1.msra.mxu0 0.0
    %1486 = vmatprep.subr.mxu0 0.0
    %1487 = vmatpush1.msra.mxu0 0.0
    %1488 = vmatprep.subr.mxu0 0.0
    %1489 = vmatpush1.msra.mxu0 0.0
    %1490 = vmatprep.subr.mxu0 0.0
    %1491 = vmatpush1.msra.mxu0 0.0
    %1492 = vmatprep.subr.mxu0 0.0
    %1493 = vmatpush1.msra.mxu0 %v1457
    %1494 = vmatprep.subr.mxu0 0.0
    %1495 = vmatpush2.msra.mxu0 0.0
    %1496 = vmatprep.subr.mxu0 0.0
    %1497 = vmatpush2.msra.mxu0 0.0
    %1498 = vmatprep.subr.mxu0 0.0
    %1499 = vmatpush2.msra.mxu0 0.0
    %1500 = vmatprep.subr.mxu0 0.0
    %1501 = vmatpush2.msra.mxu0 0.0
    %1502 = vmatprep.subr.mxu0 0.0
    %1503 = vmatpush2.msra.mxu0 0.0
    %1504 = vmatprep.subr.mxu0 0.0
    %1505 = vmatpush2.msra.mxu0 0.0
    %1506 = vmatprep.subr.mxu0 0.0
    %1507 = vmatpush2.msra.mxu0 0.0
    %1508 = vmatprep.subr.mxu0 0.0
    %1509 = vmatpush2.msra.mxu0 0.0
    %1510 = vmatprep.subr.mxu0 0.0
    %1511 = vmatpush2.msra.mxu0 0.0
    %1512 = vmatprep.subr.mxu0 0.0
    %1513 = vmatpush2.msra.mxu0 0.0
    %1514 = vmatprep.subr.mxu0 0.0
    %1515 = vmatpush2.msra.mxu0 0.0
    %1516 = vmatprep.subr.mxu0 0.0
    %1517 = vmatpush2.msra.mxu0 0.0
    %1518 = vmatprep.subr.mxu0 0.0
    %1519 = vmatpush2.msra.mxu0 0.0
    %1520 = vmatprep.subr.mxu0 0.0
    %1521 = vmatpush2.msra.mxu0 0.0
    %1522 = vmatprep.subr.mxu0 0.0
    %1523 = vmatpush2.msra.mxu0 0.0
    %1524 = vmatprep.subr.mxu0 0.0
    %1525 = vmatpush2.msra.mxu0 0.0
    %1526 = vmatprep.mubr.f32.mxu0 0.0
    %1527 = vmatmul.mubr.f32.gmra.mxu0 %v1460
    %v1528 = vpop.f32.mrf.mxu0
    %v1529 = vadd.f32 0.0, %v1528
    %v1530 = vpop.f32.mrf.mxu0
    %1531 = vdwg.mxu0
    %v1532 = vrcp.pop %v1455
    %v1533 = vmul.f32 %v1529, %v1532
    %1535 = vrot.lane.b32.xlu0 %v1201, 8
    %v1536 = vpop.permute.xlu0 %1535
    %1539 = vrot.lane.b32.xlu0 %v1367, 16
    %v1540 = vpop.permute.xlu0 %1539
    %1543 = vrot.lane.b32.xlu0 %v1533, 24
    %v1544 = vpop.permute.xlu0 %1543
    %v1546 = vsel %vm193, %v1035, %v1536
    %v1547 = vsel %vm867, %v1546, %v1540
    %v1548 = vsel %vm869, %v1547, %v1544
    %v1549 = vld [vmem:[%s3] sm:$0xff]
    %v1550 = vld [vmem:[%s3 + $0x8] sm:$0xff]
    %v1551 = vld [vmem:[%s3 + $0x10] sm:$0xff]
    %v1552 = vld [vmem:[%s3 + $0x18] sm:$0xff]
    %v1553 = vld [vmem:[%s4] sm:$0x1]
    %v1555 = vlaneseq
    %v1556 = vshrl.u32 %v1555, 7
    %v1557 = vsub.s32 0, %v1556
    %v1558 = vrot.slane %v1553, %v1557
    %v1561 = vsel %vm49, %v870, 0
    %v1564 = vsel %vm49, %v1548, 0
    %1566 = vmatprep.subr.mxu0 0.0
    %1567 = vmatpush1.msra.mxu0 0.0
    %1568 = vmatprep.subr.mxu0 0.0
    %1569 = vmatpush1.msra.mxu0 0.0
    %1570 = vmatprep.subr.mxu0 0.0
    %1571 = vmatpush1.msra.mxu0 0.0
    %1572 = vmatprep.subr.mxu0 0.0
    %1573 = vmatpush1.msra.mxu0 0.0
    %1574 = vmatprep.subr.mxu0 0.0
    %1575 = vmatpush1.msra.mxu0 0.0
    %1576 = vmatprep.subr.mxu0 0.0
    %1577 = vmatpush1.msra.mxu0 0.0
    %1578 = vmatprep.subr.mxu0 0.0
    %1579 = vmatpush1.msra.mxu0 0.0
    %1580 = vmatprep.subr.mxu0 0.0
    %1581 = vmatpush1.msra.mxu0 0.0
    %1582 = vmatprep.subr.mxu0 0.0
    %1583 = vmatpush1.msra.mxu0 0.0
    %1584 = vmatprep.subr.mxu0 0.0
    %1585 = vmatpush1.msra.mxu0 0.0
    %1586 = vmatprep.subr.mxu0 0.0
    %1587 = vmatpush1.msra.mxu0 0.0
    %1588 = vmatprep.subr.mxu0 0.0
    %1589 = vmatpush1.msra.mxu0 0.0
    %1590 = vmatprep.subr.mxu0 0.0
    %1591 = vmatpush1.msra.mxu0 %v1552
    %1592 = vmatprep.subr.mxu0 0.0
    %1593 = vmatpush1.msra.mxu0 %v1551
    %1594 = vmatprep.subr.mxu0 0.0
    %1595 = vmatpush1.msra.mxu0 %v1550
    %1596 = vmatprep.subr.mxu0 0.0
    %1597 = vmatpush1.msra.mxu0 %v1549
    %1598 = vmatprep.subr.mxu0 0.0
    %1599 = vmatpush2.msra.mxu0 0.0
    %1600 = vmatprep.subr.mxu0 0.0
    %1601 = vmatpush2.msra.mxu0 0.0
    %1602 = vmatprep.subr.mxu0 0.0
    %1603 = vmatpush2.msra.mxu0 0.0
    %1604 = vmatprep.subr.mxu0 0.0
    %1605 = vmatpush2.msra.mxu0 0.0
    %1606 = vmatprep.subr.mxu0 0.0
    %1607 = vmatpush2.msra.mxu0 0.0
    %1608 = vmatprep.subr.mxu0 0.0
    %1609 = vmatpush2.msra.mxu0 0.0
    %1610 = vmatprep.subr.mxu0 0.0
    %1611 = vmatpush2.msra.mxu0 0.0
    %1612 = vmatprep.subr.mxu0 0.0
    %1613 = vmatpush2.msra.mxu0 0.0
    %1614 = vmatprep.subr.mxu0 0.0
    %1615 = vmatpush2.msra.mxu0 0.0
    %1616 = vmatprep.subr.mxu0 0.0
    %1617 = vmatpush2.msra.mxu0 0.0
    %1618 = vmatprep.subr.mxu0 0.0
    %1619 = vmatpush2.msra.mxu0 0.0
    %1620 = vmatprep.subr.mxu0 0.0
    %1621 = vmatpush2.msra.mxu0 0.0
    %1622 = vmatprep.subr.mxu0 0.0
    %1623 = vmatpush2.msra.mxu0 0.0
    %1624 = vmatprep.subr.mxu0 0.0
    %1625 = vmatpush2.msra.mxu0 0.0
    %1626 = vmatprep.subr.mxu0 0.0
    %1627 = vmatpush2.msra.mxu0 0.0
    %1628 = vmatprep.subr.mxu0 0.0
    %1629 = vmatpush2.msra.mxu0 0.0
    %1630 = vmatprep.mubr.f32.mxu0 0.0
    %1631 = vmatmul.mubr.f32.gmra.mxu0 %v1561
    %v1632 = vpop.f32.mrf.mxu0
    %v1633 = vadd.f32 %v1558, %v1632
    %v1634 = vpop.f32.mrf.mxu0
    %1635 = vmatprep.mubr.f32.mxu0 0.0
    %1636 = vmatmul.mubr.f32.gmra.mxu0 %v1564
    %v1637 = vpop.f32.mrf.mxu0
    %v1638 = vadd.f32 %v1558, %v1637
    %v1639 = vpop.f32.mrf.mxu0
    %1640 = vdwg.mxu0
    %v1641 = vadd.f32 %v91, %v1633
    %v1642 = vadd.f32 %v92, %v1638
    %v1643 = vld [vmem:[%s7] sm:$0x1]
    %v1644 = vld [vmem:[%s8] sm:$0x1]
    %v1645 = vsel %vm49, %v1641, 0.0
    %1646 = vadd.xlane.f32.xlu0 %v1645
    %v1647 = vpop.xlane.xlu0 %1646
    %v1648 = vsel %vm49, %v1642, 0.0
    %1649 = vadd.xlane.f32.xlu0 %v1648
    %v1650 = vpop.xlane.xlu0 %1649
    %v1651 = vmul.f32 %v1647, %v56
    %v1652 = vmul.f32 %v1650, %v56
    %v1653 = vsub.f32 %v1641, %v1651
    %v1654 = vsub.f32 %v1642, %v1652
    %v1655 = vmul.f32 %v1653, %v1653
    %v1656 = vmul.f32 %v1654, %v1654
    %v1657 = vsel %vm49, %v1655, 0.0
    %1658 = vadd.xlane.f32.xlu0 %v1657
    %v1659 = vpop.xlane.xlu0 %1658
    %v1660 = vsel %vm49, %v1656, 0.0
    %1661 = vadd.xlane.f32.xlu0 %v1660
    %v1662 = vpop.xlane.xlu0 %1661
    %v1663 = vmul.f32 %v1659, %v56
    %v1664 = vmul.f32 %v1662, %v56
    %v1665 = vadd.f32 %v1663, 1e-05
    %v1666 = vadd.f32 %v1664, 1e-05
    %v1667 = vrsqrt.pop %v1665
    %v1668 = vrsqrt.pop %v1666
    %v1669 = vmul.f32 %v1653, %v1667
    %v1670 = vmul.f32 %v1654, %v1668
    %v1672 = vlaneseq
    %v1673 = vshrl.u32 %v1672, 7
    %v1674 = vsub.s32 0, %v1673
    %v1675 = vrot.slane %v1643, %v1674
    %v1677 = vmul.f32 %v1669, %v1675
    %v1678 = vmul.f32 %v1670, %v1675
    %v1680 = vlaneseq
    %v1681 = vshrl.u32 %v1680, 7
    %v1682 = vsub.s32 0, %v1681
    %v1683 = vrot.slane %v1644, %v1682
    %v1685 = vadd.f32 %v1677, %v1683
    %v1686 = vadd.f32 %v1678, %v1683
    %v1687 = vld [vmem:[%s9] sm:$0xff]
    %v1688 = vld [vmem:[%s9 + $0x8] sm:$0xff]
    %v1689 = vld [vmem:[%s9 + $0x10] sm:$0xff]
    %v1690 = vld [vmem:[%s9 + $0x18] sm:$0xff]
    %v1691 = vld [vmem:[%s10] sm:$0x1]
    %v1693 = vlaneseq
    %v1694 = vshrl.u32 %v1693, 7
    %v1695 = vsub.s32 0, %v1694
    %v1696 = vrot.slane %v1691, %v1695
    %v1699 = vsel %vm49, %v1685, 0
    %v1702 = vsel %vm49, %v1686, 0
    %1704 = vmatprep.subr.mxu0 0.0
    %1705 = vmatpush1.msra.mxu0 0.0
    %1706 = vmatprep.subr.mxu0 0.0
    %1707 = vmatpush1.msra.mxu0 0.0
    %1708 = vmatprep.subr.mxu0 0.0
    %1709 = vmatpush1.msra.mxu0 0.0
    %1710 = vmatprep.subr.mxu0 0.0
    %1711 = vmatpush1.msra.mxu0 0.0
    %1712 = vmatprep.subr.mxu0 0.0
    %1713 = vmatpush1.msra.mxu0 0.0
    %1714 = vmatprep.subr.mxu0 0.0
    %1715 = vmatpush1.msra.mxu0 0.0
    %1716 = vmatprep.subr.mxu0 0.0
    %1717 = vmatpush1.msra.mxu0 0.0
    %1718 = vmatprep.subr.mxu0 0.0
    %1719 = vmatpush1.msra.mxu0 0.0
    %1720 = vmatprep.subr.mxu0 0.0
    %1721 = vmatpush1.msra.mxu0 0.0
    %1722 = vmatprep.subr.mxu0 0.0
    %1723 = vmatpush1.msra.mxu0 0.0
    %1724 = vmatprep.subr.mxu0 0.0
    %1725 = vmatpush1.msra.mxu0 0.0
    %1726 = vmatprep.subr.mxu0 0.0
    %1727 = vmatpush1.msra.mxu0 0.0
    %1728 = vmatprep.subr.mxu0 0.0
    %1729 = vmatpush1.msra.mxu0 %v1690
    %1730 = vmatprep.subr.mxu0 0.0
    %1731 = vmatpush1.msra.mxu0 %v1689
    %1732 = vmatprep.subr.mxu0 0.0
    %1733 = vmatpush1.msra.mxu0 %v1688
    %1734 = vmatprep.subr.mxu0 0.0
    %1735 = vmatpush1.msra.mxu0 %v1687
    %1736 = vmatprep.subr.mxu0 0.0
    %1737 = vmatpush2.msra.mxu0 0.0
    %1738 = vmatprep.subr.mxu0 0.0
    %1739 = vmatpush2.msra.mxu0 0.0
    %1740 = vmatprep.subr.mxu0 0.0
    %1741 = vmatpush2.msra.mxu0 0.0
    %1742 = vmatprep.subr.mxu0 0.0
    %1743 = vmatpush2.msra.mxu0 0.0
    %1744 = vmatprep.subr.mxu0 0.0
    %1745 = vmatpush2.msra.mxu0 0.0
    %1746 = vmatprep.subr.mxu0 0.0
    %1747 = vmatpush2.msra.mxu0 0.0
    %1748 = vmatprep.subr.mxu0 0.0
    %1749 = vmatpush2.msra.mxu0 0.0
    %1750 = vmatprep.subr.mxu0 0.0
    %1751 = vmatpush2.msra.mxu0 0.0
    %1752 = vmatprep.subr.mxu0 0.0
    %1753 = vmatpush2.msra.mxu0 0.0
    %1754 = vmatprep.subr.mxu0 0.0
    %1755 = vmatpush2.msra.mxu0 0.0
    %1756 = vmatprep.subr.mxu0 0.0
    %1757 = vmatpush2.msra.mxu0 0.0
    %1758 = vmatprep.subr.mxu0 0.0
    %1759 = vmatpush2.msra.mxu0 0.0
    %1760 = vmatprep.subr.mxu0 0.0
    %1761 = vmatpush2.msra.mxu0 0.0
    %1762 = vmatprep.subr.mxu0 0.0
    %1763 = vmatpush2.msra.mxu0 0.0
    %1764 = vmatprep.subr.mxu0 0.0
    %1765 = vmatpush2.msra.mxu0 0.0
    %1766 = vmatprep.subr.mxu0 0.0
    %1767 = vmatpush2.msra.mxu0 0.0
    %1768 = vmatprep.mubr.f32.mxu0 0.0
    %1769 = vmatmul.mubr.f32.gmra.mxu0 %v1699
    %v1770 = vpop.f32.mrf.mxu0
    %v1771 = vadd.f32 %v1696, %v1770
    %v1772 = vpop.f32.mrf.mxu0
    %1773 = vmatprep.mubr.f32.mxu0 0.0
    %1774 = vmatmul.mubr.f32.gmra.mxu0 %v1702
    %v1775 = vpop.f32.mrf.mxu0
    %v1776 = vadd.f32 %v1696, %v1775
    %v1777 = vpop.f32.mrf.mxu0
    %1778 = vdwg.mxu0
    %v1779 = vmul.f32 %v1771, 0.5
    %v1780 = vmul.f32 %v1776, 0.5
    %v1781 = vmul.f32 %v1771, 0.70710677
    %v1782 = vmul.f32 %v1776, 0.70710677
    %v1783 = verf.f32.pop %v1781
    %v1784 = verf.f32.pop %v1782
    %v1785 = vadd.f32 %v1783, 1.0
    %v1786 = vadd.f32 %v1784, 1.0
    %v1787 = vmul.f32 %v1779, %v1785
    %v1788 = vmul.f32 %v1780, %v1786
    %v1789 = vld [vmem:[%s11] sm:$0xff]
    %v1790 = vld [vmem:[%s11 + $0x8] sm:$0xff]
    %v1791 = vld [vmem:[%s11 + $0x10] sm:$0xff]
    %v1792 = vld [vmem:[%s11 + $0x18] sm:$0xff]
    %v1793 = vld [vmem:[%s11 + $0x20] sm:$0xff]
    %v1794 = vld [vmem:[%s11 + $0x28] sm:$0xff]
    %v1795 = vld [vmem:[%s11 + $0x30] sm:$0xff]
    %v1796 = vld [vmem:[%s11 + $0x38] sm:$0xff]
    %v1797 = vld [vmem:[%s11 + $0x40] sm:$0xff]
    %v1798 = vld [vmem:[%s11 + $0x48] sm:$0xff]
    %v1799 = vld [vmem:[%s11 + $0x50] sm:$0xff]
    %v1800 = vld [vmem:[%s11 + $0x58] sm:$0xff]
    %v1801 = vld [vmem:[%s11 + $0x60] sm:$0xff]
    %v1802 = vld [vmem:[%s11 + $0x68] sm:$0xff]
    %v1803 = vld [vmem:[%s11 + $0x70] sm:$0xff]
    %v1804 = vld [vmem:[%s11 + $0x78] sm:$0xff]
    %v1805 = vld [vmem:[%s12] sm:$0x1]
    %v1807 = vlaneseq
    %v1808 = vshrl.u32 %v1807, 7
    %v1809 = vsub.s32 0, %v1808
    %v1810 = vrot.slane %v1805, %v1809
    %1812 = vmatprep.subr.mxu0 0.0
    %1813 = vmatpush1.msra.mxu0 %v1804
    %1814 = vmatprep.subr.mxu0 0.0
    %1815 = vmatpush1.msra.mxu0 %v1803
    %1816 = vmatprep.subr.mxu0 0.0
    %1817 = vmatpush1.msra.mxu0 %v1802
    %1818 = vmatprep.subr.mxu0 0.0
    %1819 = vmatpush1.msra.mxu0 %v1801
    %1820 = vmatprep.subr.mxu0 0.0
    %1821 = vmatpush1.msra.mxu0 %v1800
    %1822 = vmatprep.subr.mxu0 0.0
    %1823 = vmatpush1.msra.mxu0 %v1799
    %1824 = vmatprep.subr.mxu0 0.0
    %1825 = vmatpush1.msra.mxu0 %v1798
    %1826 = vmatprep.subr.mxu0 0.0
    %1827 = vmatpush1.msra.mxu0 %v1797
    %1828 = vmatprep.subr.mxu0 0.0
    %1829 = vmatpush1.msra.mxu0 %v1796
    %1830 = vmatprep.subr.mxu0 0.0
    %1831 = vmatpush1.msra.mxu0 %v1795
    %1832 = vmatprep.subr.mxu0 0.0
    %1833 = vmatpush1.msra.mxu0 %v1794
    %1834 = vmatprep.subr.mxu0 0.0
    %1835 = vmatpush1.msra.mxu0 %v1793
    %1836 = vmatprep.subr.mxu0 0.0
    %1837 = vmatpush1.msra.mxu0 %v1792
    %1838 = vmatprep.subr.mxu0 0.0
    %1839 = vmatpush1.msra.mxu0 %v1791
    %1840 = vmatprep.subr.mxu0 0.0
    %1841 = vmatpush1.msra.mxu0 %v1790
    %1842 = vmatprep.subr.mxu0 0.0
    %1843 = vmatpush1.msra.mxu0 %v1789
    %1844 = vmatprep.subr.mxu0 0.0
    %1845 = vmatpush2.msra.mxu0 0.0
    %1846 = vmatprep.subr.mxu0 0.0
    %1847 = vmatpush2.msra.mxu0 0.0
    %1848 = vmatprep.subr.mxu0 0.0
    %1849 = vmatpush2.msra.mxu0 0.0
    %1850 = vmatprep.subr.mxu0 0.0
    %1851 = vmatpush2.msra.mxu0 0.0
    %1852 = vmatprep.subr.mxu0 0.0
    %1853 = vmatpush2.msra.mxu0 0.0
    %1854 = vmatprep.subr.mxu0 0.0
    %1855 = vmatpush2.msra.mxu0 0.0
    %1856 = vmatprep.subr.mxu0 0.0
    %1857 = vmatpush2.msra.mxu0 0.0
    %1858 = vmatprep.subr.mxu0 0.0
    %1859 = vmatpush2.msra.mxu0 0.0
    %1860 = vmatprep.subr.mxu0 0.0
    %1861 = vmatpush2.msra.mxu0 0.0
    %1862 = vmatprep.subr.mxu0 0.0
    %1863 = vmatpush2.msra.mxu0 0.0
    %1864 = vmatprep.subr.mxu0 0.0
    %1865 = vmatpush2.msra.mxu0 0.0
    %1866 = vmatprep.subr.mxu0 0.0
    %1867 = vmatpush2.msra.mxu0 0.0
    %1868 = vmatprep.subr.mxu0 0.0
    %1869 = vmatpush2.msra.mxu0 0.0
    %1870 = vmatprep.subr.mxu0 0.0
    %1871 = vmatpush2.msra.mxu0 0.0
    %1872 = vmatprep.subr.mxu0 0.0
    %1873 = vmatpush2.msra.mxu0 0.0
    %1874 = vmatprep.subr.mxu0 0.0
    %1875 = vmatpush2.msra.mxu0 0.0
    %1876 = vmatprep.mubr.f32.mxu0 0.0
    %1877 = vmatmul.mubr.f32.gmra.mxu0 %v1787
    %v1878 = vpop.f32.mrf.mxu0
    %v1879 = vadd.f32 %v1810, %v1878
    %v1880 = vpop.f32.mrf.mxu0
    %1881 = vmatprep.mubr.f32.mxu0 0.0
    %1882 = vmatmul.mubr.f32.gmra.mxu0 %v1788
    %v1883 = vpop.f32.mrf.mxu0
    %v1884 = vadd.f32 %v1810, %v1883
    %v1885 = vpop.f32.mrf.mxu0
    %1886 = vdwg.mxu0
    %v1887 = vadd.f32 %v1641, %v1879
    %v1888 = vadd.f32 %v1642, %v1884
    %1889 = vst.msk [vmem:[#allocation2] sm:$0xff] %vm49, %v1887
    %1890 = vst.msk [vmem:[#allocation2 + $0x8] sm:$0xff] %vm49, %v1888
    // Predicated region
    $region54: #{tpu_custom_call.1} parent=1 // pred_check
      _
    $region55: #{tpu_custom_call.1} parent=1 // pred_check_branch
      %1892 = sbr.rel (0) target = $region57
    $region56: #{tpu_custom_call.1} parent=1 // pred_region
      %s1894 = ssub.s32 256, 256
      %1895 = vsyncadd [#allocation3], %s1894
      %s1896 = sshll.u32 [#allocation2], 4
      %s1897 = int_to_ptr.vmem [resolvable:$true] %s1896
      %1902 = dma.vmem_to_hbm [thread:$0]  %s1897, 256, %s13, [#allocation3], 128, 128, 8
    $region57: #{tpu_custom_call.1} parent=1 // pred_fallthru
      _
    // Predicated region
    $region58: #{tpu_custom_call.1} parent=1 // pred_check
      _
    $region59: #{tpu_custom_call.1} parent=1 // pred_check_branch
      %1904 = sbr.rel (0) target = $region61
    $region60: #{tpu_custom_call.1} parent=1 // pred_region
      %1905 = dma.done [#allocation3], 256
    $region61: #{tpu_custom_call.1} parent=1 // pred_fallthru
      _
    %1906 = vsyncpa [#allocation3], 1

</llo_original>
